<compile_context>
chip_gen: v6e
topology: v6e:2x2x1
jax: 0.10.0
libtpu: 0.0.40
codegen_flags: <defaults>
</compile_context>

<pallas_src>
import jax
import jax.numpy as jnp
from jax.experimental import pallas as pl
from jax.experimental.pallas import tpu as pltpu


# ---- logical (PyTorch) sizes ----
IN_CH = 31 * 10          # 310
REDUCTION = IN_CH // 2   # 155
H1 = 100
H2 = 50
NUM_CLASSES = 31

# ---- lane-aligned padded sizes (multiples of 128) ----
IN_PAD = 384
RED_PAD = 256
H1_PAD = 128
H2_PAD = 128
OUT_PAD = 128

# First lane-tile that contains padding columns of the 310->384 feature pad.
_PAD_TILE_START = (IN_CH // 128) * 128   # 256


def _round_up(n, m):
    return ((n + m - 1) // m) * m


def fc_net_kernel(x_ref,
                  wse1_ref, bse1_ref, wse2_ref, bse2_ref,
                  w1_ref, b1_ref, a1_ref,
                  w2_ref, b2_ref, a2_ref,
                  wfc_ref, bfc_ref,
                  o_ref,
                  xp_ref):
    # ---- build a lane-aligned, exactly-zero-padded copy of x in VMEM ----
    # Zero the last lane-tile first (aligned 128-wide store), then copy the
    # 310 real feature columns; columns [IN_CH, IN_PAD) remain exactly zero.
    rows = xp_ref.shape[0]
    xp_ref[:, _PAD_TILE_START:] = jnp.zeros(
        (rows, IN_PAD - _PAD_TILE_START), jnp.float32)
    xp_ref[:, :IN_CH] = x_ref[...]
    xp = xp_ref[...]                                                  # (BM, 384) f32
    xb = xp.astype(jnp.bfloat16)

    # ---- SEScale: fc1 -> relu -> fc2 -> sigmoid, then gate the input ----
    h = jnp.dot(xb, wse1_ref[...], preferred_element_type=jnp.float32)  # (BM, 256)
    h = jnp.maximum(h + bse1_ref[...], 0.0)
    s = jnp.dot(h.astype(jnp.bfloat16), wse2_ref[...],
                preferred_element_type=jnp.float32)                     # (BM, 384)
    s = s + bse2_ref[...]
    # sigmoid(s) = 0.5 * tanh(0.5 * s) + 0.5  (single EUP transcendental)
    sig = 0.5 * jnp.tanh(0.5 * s) + 0.5
    xg = sig * xp                                # f32 gate; pad cols stay exactly 0

    # ---- linear1 + PReLU ----
    h1 = jnp.dot(xg.astype(jnp.bfloat16), w1_ref[...],
                 preferred_element_type=jnp.float32)                    # (BM, 128)
    h1 = h1 + b1_ref[...]
    a1 = a1_ref[0, 0]                                                   # SMEM scalar
    h1 = jnp.where(h1 >= 0.0, h1, a1 * h1)
    # dropout(p=0.2) -> identity (see TODO above)

    # ---- linear2 + PReLU ----
    h2 = jnp.dot(h1.astype(jnp.bfloat16), w2_ref[...],
                 preferred_element_type=jnp.float32)                    # (BM, 128)
    h2 = h2 + b2_ref[...]
    a2 = a2_ref[0, 0]                                                   # SMEM scalar
    h2 = jnp.where(h2 >= 0.0, h2, a2 * h2)
    # dropout(p=0.2) -> identity

    # ---- final fc (lane-dense padded output: 31 real + 97 zero columns) ----
    y = jnp.dot(h2.astype(jnp.bfloat16), wfc_ref[...],
                preferred_element_type=jnp.float32)                     # (BM, 128)
    y = y + bfc_ref[...]
    o_ref[...] = y.astype(o_ref.dtype)


def _choose_block(batch, block_rows):
    """Balanced batch blocks; >=2 grid steps for B>=16 (v7x megacore)."""
    nb = -(-batch // block_rows)            # ceil
    if nb == 1 and batch >= 16:
        nb = 2
    if nb == 1:
        return batch                        # single full-extent block (always legal)
    return _round_up(-(-batch // nb), 8)


def fc_net_forward(x, kp, *, block_rows=2048):
    """x: (B, 310) float32.  kp: padded/bf16 kernel params (prepare_kernel_params)."""
    B = x.shape[0]
    x = x.astype(jnp.float32)

    bm = _choose_block(B, block_rows)
    grid = (-(-B // bm),)                   # ragged final block handled by Pallas

    args = (
        x,
        kp["wse1"], kp["bse1"], kp["wse2"], kp["bse2"],
        kp["w1"], kp["b1"], kp["a1"],
        kp["w2"], kp["b2"], kp["a2"],
        kp["wfc"], kp["bfc"],
    )

    rows_map = lambda i: (i, 0)       # blocked over batch
    const_map = lambda i: (0, 0)      # resident across all grid steps

    def vmem_const(a):
        return pl.BlockSpec(a.shape, const_map)

    smem = pl.BlockSpec(memory_space=pltpu.MemorySpace.SMEM)

    in_specs = [
        pl.BlockSpec((bm, IN_CH), rows_map),    # x, unpadded feature axis (full dim)
        vmem_const(kp["wse1"]), vmem_const(kp["bse1"]),
        vmem_const(kp["wse2"]), vmem_const(kp["bse2"]),
        vmem_const(kp["w1"]), vmem_const(kp["b1"]), smem,   # a1 in SMEM
        vmem_const(kp["w2"]), vmem_const(kp["b2"]), smem,   # a2 in SMEM
        vmem_const(kp["wfc"]), vmem_const(kp["bfc"]),
    ]
    out_spec = pl.BlockSpec((bm, OUT_PAD), rows_map)

    # Advisory cost estimate so XLA schedules around the custom call sensibly.
    flops = 2 * B * (IN_PAD * RED_PAD + RED_PAD * IN_PAD
                     + IN_PAD * H1_PAD + H1_PAD * H2_PAD + H2_PAD * OUT_PAD)
    param_bytes = sum(int(a.size) * a.dtype.itemsize for a in args[1:])
    bytes_accessed = B * (IN_CH + OUT_PAD) * 4 + param_bytes
    cost = pl.CostEstimate(flops=flops, transcendentals=B * IN_PAD,
                           bytes_accessed=bytes_accessed)

    y = pl.pallas_call(
        fc_net_kernel,
        out_shape=jax.ShapeDtypeStruct((B, OUT_PAD), jnp.float32),
        grid=grid,
        in_specs=in_specs,
        out_specs=out_spec,
        scratch_shapes=[pltpu.VMEM((bm, IN_PAD), jnp.float32)],
        compiler_params=pltpu.CompilerParams(
            dimension_semantics=("parallel",),
            vmem_limit_bytes=48 * 1024 * 1024,
        ),
        cost_estimate=cost,
    )(*args)

    return y[:, :NUM_CLASSES]


def init_params(key):
    """Unpadded f32 parameters with the module's shapes.

    Weights are stored as (in_features, out_features) — transposed vs. PyTorch.
    Biases are stored as (1, out_features).  PReLU slopes use PyTorch's default
    init of 0.25.
    """
    ks = jax.random.split(key, 10)

    def lin(kw, kb, fan_in, fan_out):
        bound = 1.0 / jnp.sqrt(jnp.float32(fan_in))
        w = jax.random.uniform(kw, (fan_in, fan_out), jnp.float32, -bound, bound)
        b = jax.random.uniform(kb, (1, fan_out), jnp.float32, -bound, bound)
        return w, b

    wse1, bse1 = lin(ks[0], ks[1], IN_CH, REDUCTION)
    wse2, bse2 = lin(ks[2], ks[3], REDUCTION, IN_CH)
    w1, b1 = lin(ks[4], ks[5], IN_CH, H1)
    w2, b2 = lin(ks[6], ks[7], H1, H2)
    wfc, bfc = lin(ks[8], ks[9], H2, NUM_CLASSES)

    return {
        "wse1": wse1, "bse1": bse1, "wse2": wse2, "bse2": bse2,
        "w1": w1, "b1": b1, "a1": jnp.full((1, 1), 0.25, jnp.float32),
        "w2": w2, "b2": b2, "a2": jnp.full((1, 1), 0.25, jnp.float32),
        "wfc": wfc, "bfc": bfc,
    }


def prepare_kernel_params(p):
    """Zero-pad to lane-aligned shapes; weights to bf16 (MXU operands),
    biases stay f32, PReLU slopes stay f32 (1,1) for SMEM.  Padding is exact:
    padded weight rows/cols and bias tails are zero."""

    def pad2(a, rows, cols):
        return jnp.pad(a, ((0, rows - a.shape[0]), (0, cols - a.shape[1])))

    return {
        "wse1": pad2(p["wse1"], IN_PAD, RED_PAD).astype(jnp.bfloat16),
        "bse1": pad2(p["bse1"], 1, RED_PAD),
        "wse2": pad2(p["wse2"], RED_PAD, IN_PAD).astype(jnp.bfloat16),
        "bse2": pad2(p["bse2"], 1, IN_PAD),
        "w1": pad2(p["w1"], IN_PAD, H1_PAD).astype(jnp.bfloat16),
        "b1": pad2(p["b1"], 1, H1_PAD),
        "a1": p["a1"],
        "w2": pad2(p["w2"], H1_PAD, H2_PAD).astype(jnp.bfloat16),
        "b2": pad2(p["b2"], 1, H2_PAD),
        "a2": p["a2"],
        "wfc": pad2(p["wfc"], H2_PAD, OUT_PAD).astype(jnp.bfloat16),
        "bfc": pad2(p["bfc"], 1, OUT_PAD),
    }


def _reference_forward(x, p):
    """Pure-JAX f32 reference (matches the PyTorch module, eval-mode dropout)."""
    h = jnp.maximum(x @ p["wse1"] + p["bse1"], 0.0)
    s = jax.nn.sigmoid(h @ p["wse2"] + p["bse2"])
    x = s * x
    h1 = x @ p["w1"] + p["b1"]
    h1 = jnp.where(h1 >= 0, h1, p["a1"][0, 0] * h1)
    h2 = h1 @ p["w2"] + p["b2"]
    h2 = jnp.where(h2 >= 0, h2, p["a2"][0, 0] * h2)
    return h2 @ p["wfc"] + p["bfc"]


if __name__ == "__main__":
    key = jax.random.PRNGKey(0)
    k_param, k_x, k_x2 = jax.random.split(key, 3)
    params = init_params(k_param)
    kparams = prepare_kernel_params(params)

    # Small single-block case.
    B = 8
    x = jax.random.normal(k_x, (B, IN_CH), jnp.float32)
    out = jax.block_until_ready(fc_net_forward(x, kparams))
    ref = _reference_forward(x, params)
    assert out.shape == (B, NUM_CLASSES)
    err = float(jnp.max(jnp.abs(out - ref)))
    assert jnp.allclose(out, ref, atol=5e-2, rtol=5e-2), f"max abs err {err}"

    # Small multi-block case (exercises balanced blocks + ragged tail block).
    B2 = 40
    x2 = jax.random.normal(k_x2, (B2, IN_CH), jnp.float32)
    out2 = jax.block_until_ready(fc_net_forward(x2, kparams))
    ref2 = _reference_forward(x2, params)
    assert out2.shape == (B2, NUM_CLASSES)
    err2 = float(jnp.max(jnp.abs(out2 - ref2)))
    assert jnp.allclose(out2, ref2, atol=5e-2, rtol=5e-2), f"max abs err {err2}"

    print("KERNEL_OK")
</pallas_src>

<mosaic_0001>
module attributes {stable_mosaic.version = 11 : i64} {
  func.func @fc_net_kernel(%arg0: i32, %arg1: memref<8x310xf32, #tpu.memory_space<vmem>>, %arg2: memref<384x256xbf16, #tpu.memory_space<vmem>>, %arg3: memref<1x256xf32, #tpu.memory_space<vmem>>, %arg4: memref<256x384xbf16, #tpu.memory_space<vmem>>, %arg5: memref<1x384xf32, #tpu.memory_space<vmem>>, %arg6: memref<384x128xbf16, #tpu.memory_space<vmem>>, %arg7: memref<1x128xf32, #tpu.memory_space<vmem>>, %arg8: memref<1x1xf32, #tpu.memory_space<smem>>, %arg9: memref<128x128xbf16, #tpu.memory_space<vmem>>, %arg10: memref<1x128xf32, #tpu.memory_space<vmem>>, %arg11: memref<1x1xf32, #tpu.memory_space<smem>>, %arg12: memref<128x128xbf16, #tpu.memory_space<vmem>>, %arg13: memref<1x128xf32, #tpu.memory_space<vmem>>, %arg14: memref<8x128xf32, #tpu.memory_space<vmem>>, %arg15: memref<8x384xf32, #tpu.memory_space<vmem>>) attributes {dimension_semantics = [#tpu.dimension_semantics<parallel>], iteration_bounds = array<i64: 1>, scalar_prefetch = 0 : i64, scratch_operands = 1 : i64, tpu.core_type = #tpu.core_type<tc>, window_params = [{transform_indices = @transform_0, window_bounds = array<i64: 8, 310>}, {pipeline_mode = #tpu.pipeline_mode<synchronous>, transform_indices = @transform_1, window_bounds = array<i64: 384, 256>}, {pipeline_mode = #tpu.pipeline_mode<synchronous>, transform_indices = @transform_2, window_bounds = array<i64: 1, 256>}, {pipeline_mode = #tpu.pipeline_mode<synchronous>, transform_indices = @transform_3, window_bounds = array<i64: 256, 384>}, {pipeline_mode = #tpu.pipeline_mode<synchronous>, transform_indices = @transform_4, window_bounds = array<i64: 1, 384>}, {pipeline_mode = #tpu.pipeline_mode<synchronous>, transform_indices = @transform_5, window_bounds = array<i64: 384, 128>}, {pipeline_mode = #tpu.pipeline_mode<synchronous>, transform_indices = @transform_6, window_bounds = array<i64: 1, 128>}, {transform_indices = @transform_7, window_bounds = array<i64: 1, 1>}, {pipeline_mode = #tpu.pipeline_mode<synchronous>, transform_indices = @transform_8, window_bounds = array<i64: 128, 128>}, {pipeline_mode = #tpu.pipeline_mode<synchronous>, transform_indices = @transform_9, window_bounds = array<i64: 1, 128>}, {transform_indices = @transform_10, window_bounds = array<i64: 1, 1>}, {pipeline_mode = #tpu.pipeline_mode<synchronous>, transform_indices = @transform_11, window_bounds = array<i64: 128, 128>}, {pipeline_mode = #tpu.pipeline_mode<synchronous>, transform_indices = @transform_12, window_bounds = array<i64: 1, 128>}, {transform_indices = @transform_13, window_bounds = array<i64: 8, 128>}]} {
    %cst = arith.constant 0.000000e+00 : f32
    %0 = vector.broadcast %cst : f32 to vector<8x128xf32>
    %c0 = arith.constant 0 : index
    %c256 = arith.constant 256 : index
    %1 = vector.load %arg15[%c0, %c256] : memref<8x384xf32, #tpu.memory_space<vmem>>, vector<8x128xf32>
    tpu.vector_store %arg15[%c0, %c256], %0 {strides = array<i32>} : memref<8x384xf32, #tpu.memory_space<vmem>>, vector<8x128xf32>,
    %c0_0 = arith.constant 0 : index
    %c0_1 = arith.constant 0 : index
    %2 = vector.load %arg1[%c0_0, %c0_1] : memref<8x310xf32, #tpu.memory_space<vmem>>, vector<8x310xf32>
    %c0_2 = arith.constant 0 : index
    %c0_3 = arith.constant 0 : index
    %3 = vector.load %arg15[%c0_2, %c0_3] : memref<8x384xf32, #tpu.memory_space<vmem>>, vector<8x310xf32>
    tpu.vector_store %arg15[%c0_2, %c0_3], %2 {strides = array<i32>} : memref<8x384xf32, #tpu.memory_space<vmem>>, vector<8x310xf32>,
    %c0_4 = arith.constant 0 : index
    %c0_5 = arith.constant 0 : index
    %4 = vector.load %arg15[%c0_4, %c0_5] : memref<8x384xf32, #tpu.memory_space<vmem>>, vector<8x384xf32>
    %5 = arith.truncf %4 : vector<8x384xf32> to vector<8x384xbf16>
    %c0_6 = arith.constant 0 : index
    %c0_7 = arith.constant 0 : index
    %6 = vector.load %arg2[%c0_6, %c0_7] : memref<384x256xbf16, #tpu.memory_space<vmem>>, vector<384x256xbf16>
    %cst_8 = arith.constant dense<0.000000e+00> : vector<8x256xf32>
    %7 = tpu.matmul %5, %6, %cst_8 {dimension_numbers = #tpu.dot_dimension_numbers<[1], [0], [0], [1], [0, 0, 1, 1], [], []>} : vector<8x384xbf16>, vector<384x256xbf16>, vector<8x256xf32> -> vector<8x256xf32>
    %c0_9 = arith.constant 0 : index
    %c0_10 = arith.constant 0 : index
    %8 = vector.load %arg3[%c0_9, %c0_10] : memref<1x256xf32, #tpu.memory_space<vmem>>, vector<1x256xf32>
    %9 = vector.broadcast %8 : vector<1x256xf32> to vector<8x256xf32>
    %10 = arith.addf %7, %9 : vector<8x256xf32>
    %cst_11 = arith.constant 0.000000e+00 : f32
    %11 = vector.broadcast %cst_11 : f32 to vector<8x256xf32>
    %12 = arith.maximumf %10, %11 : vector<8x256xf32>
    %13 = arith.truncf %12 : vector<8x256xf32> to vector<8x256xbf16>
    %c0_12 = arith.constant 0 : index
    %c0_13 = arith.constant 0 : index
    %14 = vector.load %arg4[%c0_12, %c0_13] : memref<256x384xbf16, #tpu.memory_space<vmem>>, vector<256x384xbf16>
    %cst_14 = arith.constant dense<0.000000e+00> : vector<8x384xf32>
    %15 = tpu.matmul %13, %14, %cst_14 {dimension_numbers = #tpu.dot_dimension_numbers<[1], [0], [0], [1], [0, 0, 1, 1], [], []>} : vector<8x256xbf16>, vector<256x384xbf16>, vector<8x384xf32> -> vector<8x384xf32>
    %c0_15 = arith.constant 0 : index
    %c0_16 = arith.constant 0 : index
    %16 = vector.load %arg5[%c0_15, %c0_16] : memref<1x384xf32, #tpu.memory_space<vmem>>, vector<1x384xf32>
    %17 = vector.broadcast %16 : vector<1x384xf32> to vector<8x384xf32>
    %18 = arith.addf %15, %17 : vector<8x384xf32>
    %cst_17 = arith.constant 5.000000e-01 : f32
    %19 = vector.broadcast %cst_17 : f32 to vector<8x384xf32>
    %20 = arith.mulf %19, %18 : vector<8x384xf32>
    %21 = math.tanh %20 : vector<8x384xf32>
    %cst_18 = arith.constant 5.000000e-01 : f32
    %22 = vector.broadcast %cst_18 : f32 to vector<8x384xf32>
    %23 = arith.mulf %22, %21 : vector<8x384xf32>
    %cst_19 = arith.constant 5.000000e-01 : f32
    %24 = vector.broadcast %cst_19 : f32 to vector<8x384xf32>
    %25 = arith.addf %23, %24 : vector<8x384xf32>
    %26 = arith.mulf %25, %4 : vector<8x384xf32>
    %27 = arith.truncf %26 : vector<8x384xf32> to vector<8x384xbf16>
    %c0_20 = arith.constant 0 : index
    %c0_21 = arith.constant 0 : index
    %28 = vector.load %arg6[%c0_20, %c0_21] : memref<384x128xbf16, #tpu.memory_space<vmem>>, vector<384x128xbf16>
    %cst_22 = arith.constant dense<0.000000e+00> : vector<8x128xf32>
    %29 = tpu.matmul %27, %28, %cst_22 {dimension_numbers = #tpu.dot_dimension_numbers<[1], [0], [0], [1], [0, 0, 1, 1], [], []>} : vector<8x384xbf16>, vector<384x128xbf16>, vector<8x128xf32> -> vector<8x128xf32>
    %c0_23 = arith.constant 0 : index
    %c0_24 = arith.constant 0 : index
    %30 = vector.load %arg7[%c0_23, %c0_24] : memref<1x128xf32, #tpu.memory_space<vmem>>, vector<1x128xf32>
    %31 = vector.broadcast %30 : vector<1x128xf32> to vector<8x128xf32>
    %32 = arith.addf %29, %31 : vector<8x128xf32>
    %c0_25 = arith.constant 0 : index
    %c0_26 = arith.constant 0 : index
    %33 = memref.load %arg8[%c0_25, %c0_26] : memref<1x1xf32, #tpu.memory_space<smem>>
    %cst_27 = arith.constant 0.000000e+00 : f32
    %34 = vector.broadcast %cst_27 : f32 to vector<8x128xf32>
    %35 = arith.cmpf oge, %32, %34 : vector<8x128xf32>
    %36 = vector.broadcast %33 : f32 to vector<8x128xf32>
    %37 = arith.mulf %36, %32 : vector<8x128xf32>
    %38 = arith.select %35, %32, %37 : vector<8x128xi1>, vector<8x128xf32>
    %39 = arith.truncf %38 : vector<8x128xf32> to vector<8x128xbf16>
    %c0_28 = arith.constant 0 : index
    %c0_29 = arith.constant 0 : index
    %40 = vector.load %arg9[%c0_28, %c0_29] : memref<128x128xbf16, #tpu.memory_space<vmem>>, vector<128x128xbf16>
    %cst_30 = arith.constant dense<0.000000e+00> : vector<8x128xf32>
    %41 = tpu.matmul %39, %40, %cst_30 {dimension_numbers = #tpu.dot_dimension_numbers<[1], [0], [0], [1], [0, 0, 1, 1], [], []>} : vector<8x128xbf16>, vector<128x128xbf16>, vector<8x128xf32> -> vector<8x128xf32>
    %c0_31 = arith.constant 0 : index
    %c0_32 = arith.constant 0 : index
    %42 = vector.load %arg10[%c0_31, %c0_32] : memref<1x128xf32, #tpu.memory_space<vmem>>, vector<1x128xf32>
    %43 = vector.broadcast %42 : vector<1x128xf32> to vector<8x128xf32>
    %44 = arith.addf %41, %43 : vector<8x128xf32>
    %c0_33 = arith.constant 0 : index
    %c0_34 = arith.constant 0 : index
    %45 = memref.load %arg11[%c0_33, %c0_34] : memref<1x1xf32, #tpu.memory_space<smem>>
    %cst_35 = arith.constant 0.000000e+00 : f32
    %46 = vector.broadcast %cst_35 : f32 to vector<8x128xf32>
    %47 = arith.cmpf oge, %44, %46 : vector<8x128xf32>
    %48 = vector.broadcast %45 : f32 to vector<8x128xf32>
    %49 = arith.mulf %48, %44 : vector<8x128xf32>
    %50 = arith.select %47, %44, %49 : vector<8x128xi1>, vector<8x128xf32>
    %51 = arith.truncf %50 : vector<8x128xf32> to vector<8x128xbf16>
    %c0_36 = arith.constant 0 : index
    %c0_37 = arith.constant 0 : index
    %52 = vector.load %arg12[%c0_36, %c0_37] : memref<128x128xbf16, #tpu.memory_space<vmem>>, vector<128x128xbf16>
    %cst_38 = arith.constant dense<0.000000e+00> : vector<8x128xf32>
    %53 = tpu.matmul %51, %52, %cst_38 {dimension_numbers = #tpu.dot_dimension_numbers<[1], [0], [0], [1], [0, 0, 1, 1], [], []>} : vector<8x128xbf16>, vector<128x128xbf16>, vector<8x128xf32> -> vector<8x128xf32>
    %c0_39 = arith.constant 0 : index
    %c0_40 = arith.constant 0 : index
    %54 = vector.load %arg13[%c0_39, %c0_40] : memref<1x128xf32, #tpu.memory_space<vmem>>, vector<1x128xf32>
    %55 = vector.broadcast %54 : vector<1x128xf32> to vector<8x128xf32>
    %56 = arith.addf %53, %55 : vector<8x128xf32>
    %c0_41 = arith.constant 0 : index
    %c0_42 = arith.constant 0 : index
    %57 = vector.load %arg14[%c0_41, %c0_42] : memref<8x128xf32, #tpu.memory_space<vmem>>, vector<8x128xf32>
    tpu.vector_store %arg14[%c0_41, %c0_42], %56 {strides = array<i32>} : memref<8x128xf32, #tpu.memory_space<vmem>>, vector<8x128xf32>,
    return
  }
  func.func @transform_0(%arg0: i32) -> (i32, i32) {
    %c0_i32 = arith.constant 0 : i32
    %c0_i32_0 = arith.constant 0 : i32
    return %arg0, %c0_i32 : i32, i32
  }
  func.func @transform_1(%arg0: i32) -> (i32, i32) {
    %c0_i32 = arith.constant 0 : i32
    %c0_i32_0 = arith.constant 0 : i32
    %c0_i32_1 = arith.constant 0 : i32
    return %c0_i32, %c0_i32_0 : i32, i32
  }
  func.func @transform_2(%arg0: i32) -> (i32, i32) {
    %c0_i32 = arith.constant 0 : i32
    %c0_i32_0 = arith.constant 0 : i32
    %c0_i32_1 = arith.constant 0 : i32
    return %c0_i32, %c0_i32_0 : i32, i32
  }
  func.func @transform_3(%arg0: i32) -> (i32, i32) {
    %c0_i32 = arith.constant 0 : i32
    %c0_i32_0 = arith.constant 0 : i32
    %c0_i32_1 = arith.constant 0 : i32
    return %c0_i32, %c0_i32_0 : i32, i32
  }
  func.func @transform_4(%arg0: i32) -> (i32, i32) {
    %c0_i32 = arith.constant 0 : i32
    %c0_i32_0 = arith.constant 0 : i32
    %c0_i32_1 = arith.constant 0 : i32
    return %c0_i32, %c0_i32_0 : i32, i32
  }
  func.func @transform_5(%arg0: i32) -> (i32, i32) {
    %c0_i32 = arith.constant 0 : i32
    %c0_i32_0 = arith.constant 0 : i32
    %c0_i32_1 = arith.constant 0 : i32
    return %c0_i32, %c0_i32_0 : i32, i32
  }
  func.func @transform_6(%arg0: i32) -> (i32, i32) {
    %c0_i32 = arith.constant 0 : i32
    %c0_i32_0 = arith.constant 0 : i32
    %c0_i32_1 = arith.constant 0 : i32
    return %c0_i32, %c0_i32_0 : i32, i32
  }
  func.func @transform_7(%arg0: i32) -> (i32, i32) {
    %c0_i32 = arith.constant 0 : i32
    %c0_i32_0 = arith.constant 0 : i32
    %c0_i32_1 = arith.constant 0 : i32
    return %c0_i32, %c0_i32_0 : i32, i32
  }
  func.func @transform_8(%arg0: i32) -> (i32, i32) {
    %c0_i32 = arith.constant 0 : i32
    %c0_i32_0 = arith.constant 0 : i32
    %c0_i32_1 = arith.constant 0 : i32
    return %c0_i32, %c0_i32_0 : i32, i32
  }
  func.func @transform_9(%arg0: i32) -> (i32, i32) {
    %c0_i32 = arith.constant 0 : i32
    %c0_i32_0 = arith.constant 0 : i32
    %c0_i32_1 = arith.constant 0 : i32
    return %c0_i32, %c0_i32_0 : i32, i32
  }
  func.func @transform_10(%arg0: i32) -> (i32, i32) {
    %c0_i32 = arith.constant 0 : i32
    %c0_i32_0 = arith.constant 0 : i32
    %c0_i32_1 = arith.constant 0 : i32
    return %c0_i32, %c0_i32_0 : i32, i32
  }
  func.func @transform_11(%arg0: i32) -> (i32, i32) {
    %c0_i32 = arith.constant 0 : i32
    %c0_i32_0 = arith.constant 0 : i32
    %c0_i32_1 = arith.constant 0 : i32
    return %c0_i32, %c0_i32_0 : i32, i32
  }
  func.func @transform_12(%arg0: i32) -> (i32, i32) {
    %c0_i32 = arith.constant 0 : i32
    %c0_i32_0 = arith.constant 0 : i32
    %c0_i32_1 = arith.constant 0 : i32
    return %c0_i32, %c0_i32_0 : i32, i32
  }
  func.func @transform_13(%arg0: i32) -> (i32, i32) {
    %c0_i32 = arith.constant 0 : i32
    %c0_i32_0 = arith.constant 0 : i32
    return %arg0, %c0_i32 : i32, i32
  }
}

</mosaic_0001>

<llo_original>
// kernel: tpu_custom_call.1
$region0: #{tpu_custom_call.1}
  #allocation0 [shape = 'u32[]', space=smem, size = 0x4, offset = 0x4, fixed_abs, tag = 'smem constant byte address 0x4 - core index']
  #allocation1 [shape = 'u32[144,128]{1,0:T(1,128)}', space=vmem, size = 0x12000, scoped, tag = 'internal scratch']
  #allocation2 [shape = 'f32[8,384]{1,0:T(8,128)}', space=vmem, size = 0x3000, scoped, tag = 'scratch operand']
  #allocation3 [shape = 'f32[1,1]{1,0:T(1,128)S(6)}', space=smem, size = 0x200, scoped, tag = 'scoped memory for tpu_custom_call.1']
  #allocation4 [shape = 'f32[1,1]{1,0:T(1,128)S(6)}', space=smem, size = 0x200, scoped, tag = 'scoped memory for tpu_custom_call.1']
  %s0 = inlined_call_operand.hbm [shape: f32[8,310], index: 0, kind: input, shape index: {}]
  %s1 = inlined_call_operand.hbm [shape: bf16[384,256], index: 1, kind: input, shape index: {}]
  %s2 = inlined_call_operand.vmem [shape: f32[1,256], index: 2, kind: input, shape index: {}]
  %s3 = inlined_call_operand.hbm [shape: bf16[256,384], index: 3, kind: input, shape index: {}]
  %s4 = inlined_call_operand.vmem [shape: f32[1,384], index: 4, kind: input, shape index: {}]
  %s5 = inlined_call_operand.hbm [shape: bf16[384,128], index: 5, kind: input, shape index: {}]
  %s6 = inlined_call_operand.vmem [shape: f32[1,128], index: 6, kind: input, shape index: {}]
  %s7 = inlined_call_operand.<no memory space> [shape: f32[1,1], index: 7, kind: input, shape index: {}]
  %s8 = inlined_call_operand.hbm [shape: bf16[128,128], index: 8, kind: input, shape index: {}]
  %s9 = inlined_call_operand.vmem [shape: f32[1,128], index: 9, kind: input, shape index: {}]
  %s10 = inlined_call_operand.<no memory space> [shape: f32[1,1], index: 10, kind: input, shape index: {}]
  %s11 = inlined_call_operand.hbm [shape: bf16[128,128], index: 11, kind: input, shape index: {}]
  %s12 = inlined_call_operand.vmem [shape: f32[1,128], index: 12, kind: input, shape index: {}]
  %s13 = inlined_call_operand.hbm [shape: f32[8,128], index: 13, kind: output, shape index: {}]
  %s14 = sld [smem:[#allocation0]]
  $region86: #{tpu_custom_call.1} parent=0
    _
  %s16 = ssub.s32 1, %s14
  %s17 = scalar_select 0, %s16, %s14
  %18 = sst [smem:[#allocation3]] %s7
  %19 = sst [smem:[#allocation4]] %s10
  $region1: #{tpu_custom_call.1} parent=0
    #allocation5 [shape = 'u8[12288]{0}', space=vmem, size = 0x3000, scoped, tag = 'input window, operand 0, single buffered']
    #allocation6 [shape = 's32[1]{0}', space=sflag, size = 0x4, scoped, tag = 'scoped memory for tpu_custom_call.1']
    #allocation7 [shape = 's32[1]{0}', space=sflag, size = 0x4, scoped, tag = 'scoped memory for tpu_custom_call.1']
    #allocation8 [shape = 'u8[196608]{0}', space=vmem, size = 0x30000, scoped, tag = 'input window, operand 1, single buffered']
    #allocation9 [shape = 's32[1]{0}', space=sflag, size = 0x4, scoped, tag = 'scoped memory for tpu_custom_call.1']
    #allocation10 [shape = 'u8[196608]{0}', space=vmem, size = 0x30000, scoped, tag = 'input window, operand 3, single buffered']
    #allocation11 [shape = 'u8[98304]{0}', space=vmem, size = 0x18000, scoped, tag = 'input window, operand 5, single buffered']
    #allocation12 [shape = 's32[1]{0}', space=sflag, size = 0x4, scoped, tag = 'scoped memory for tpu_custom_call.1']
    #allocation13 [shape = 'u8[32768]{0}', space=vmem, size = 0x8000, scoped, tag = 'input window, operand 8, single buffered']
    #allocation14 [shape = 'u8[32768]{0}', space=vmem, size = 0x8000, scoped, tag = 'input window, operand 11, single buffered']
    #allocation15 [shape = 's32[1]{0}', space=sflag, size = 0x4, scoped, tag = 'scoped memory for tpu_custom_call.1']
    #allocation16 [shape = 'u8[4096]{0}', space=vmem, size = 0x1000, scoped, tag = 'output window, operand 0, single buffered']
    %20 = vsyncpa [#allocation6], 0
    %21 = vsyncpa [#allocation9], 0
    %22 = vsyncpa [#allocation12], 0
    %23 = vsyncpa [#allocation15], 0
    %24 = vsyncpa [#allocation7], 0
    // Predicated region
    $region2: #{tpu_custom_call.1} parent=1 // pred_check
      _
    $region3: #{tpu_custom_call.1} parent=1 // pred_check_branch
      %26 = sbr.rel (0) target = $region5
    $region4: #{tpu_custom_call.1} parent=1 // pred_region
      %s28 = ssub.s32 384, 384
      %29 = vsyncadd [#allocation6], %s28
      %s31 = sshll.u32 [#allocation5], 4
      %s32 = int_to_ptr.vmem [resolvable:$true] %s31
      %34 = dma.hbm_to_vmem [thread:$0]  %s0, 384, %s32, [#allocation6]
    $region5: #{tpu_custom_call.1} parent=1 // pred_fallthru
      _
    // Predicated region
    $region6: #{tpu_custom_call.1} parent=1 // pred_check
      _
    $region7: #{tpu_custom_call.1} parent=1 // pred_check_branch
      %36 = sbr.rel (0) target = $region9
    $region8: #{tpu_custom_call.1} parent=1 // pred_region
      %s38 = ssub.s32 6144, 6144
      %39 = vsyncadd [#allocation9], %s38
      %s40 = sshll.u32 [#allocation8], 4
      %s41 = int_to_ptr.vmem [resolvable:$true] %s40
      %46 = dma.hbm_to_vmem [thread:$0]  %s1, 6144, %s41, [#allocation9], 128, 128, 8
    $region9: #{tpu_custom_call.1} parent=1 // pred_fallthru
      _
    // Predicated region
    $region10: #{tpu_custom_call.1} parent=1 // pred_check
      _
    $region11: #{tpu_custom_call.1} parent=1 // pred_check_branch
      %48 = sbr.rel (0) target = $region13
    $region12: #{tpu_custom_call.1} parent=1 // pred_region
      _
    $region13: #{tpu_custom_call.1} parent=1 // pred_fallthru
      _
    // Predicated region
    $region14: #{tpu_custom_call.1} parent=1 // pred_check
      _
    $region15: #{tpu_custom_call.1} parent=1 // pred_check_branch
      %50 = sbr.rel (0) target = $region17
    $region16: #{tpu_custom_call.1} parent=1 // pred_region
      %s52 = ssub.s32 6144, 6144
      %53 = vsyncadd [#allocation9], %s52
      %s54 = sshll.u32 [#allocation10], 4
      %s55 = int_to_ptr.vmem [resolvable:$true] %s54
      %60 = dma.hbm_to_vmem [thread:$0]  %s3, 6144, %s55, [#allocation9], 192, 192, 12
    $region17: #{tpu_custom_call.1} parent=1 // pred_fallthru
      _
    // Predicated region
    $region18: #{tpu_custom_call.1} parent=1 // pred_check
      _
    $region19: #{tpu_custom_call.1} parent=1 // pred_check_branch
      %62 = sbr.rel (0) target = $region21
    $region20: #{tpu_custom_call.1} parent=1 // pred_region
      _
    $region21: #{tpu_custom_call.1} parent=1 // pred_fallthru
      _
    // Predicated region
    $region22: #{tpu_custom_call.1} parent=1 // pred_check
      _
    $region23: #{tpu_custom_call.1} parent=1 // pred_check_branch
      %64 = sbr.rel (0) target = $region25
    $region24: #{tpu_custom_call.1} parent=1 // pred_region
      %s66 = ssub.s32 3072, 3072
      %67 = vsyncadd [#allocation12], %s66
      %s68 = sshll.u32 [#allocation11], 4
      %s69 = int_to_ptr.vmem [resolvable:$true] %s68
      %74 = dma.hbm_to_vmem [thread:$0]  %s5, 3072, %s69, [#allocation12], 64, 64, 4
    $region25: #{tpu_custom_call.1} parent=1 // pred_fallthru
      _
    // Predicated region
    $region26: #{tpu_custom_call.1} parent=1 // pred_check
      _
    $region27: #{tpu_custom_call.1} parent=1 // pred_check_branch
      %76 = sbr.rel (0) target = $region29
    $region28: #{tpu_custom_call.1} parent=1 // pred_region
      _
    $region29: #{tpu_custom_call.1} parent=1 // pred_fallthru
      _
    // Predicated region
    $region30: #{tpu_custom_call.1} parent=1 // pred_check
      _
    $region31: #{tpu_custom_call.1} parent=1 // pred_check_branch
      %78 = sbr.rel (0) target = $region33
    $region32: #{tpu_custom_call.1} parent=1 // pred_region
      _
    $region33: #{tpu_custom_call.1} parent=1 // pred_fallthru
      _
    // Predicated region
    $region34: #{tpu_custom_call.1} parent=1 // pred_check
      _
    $region35: #{tpu_custom_call.1} parent=1 // pred_check_branch
      %80 = sbr.rel (0) target = $region37
    $region36: #{tpu_custom_call.1} parent=1 // pred_region
      %s82 = ssub.s32 1024, 1024
      %83 = vsyncadd [#allocation12], %s82
      %s84 = sshll.u32 [#allocation13], 4
      %s85 = int_to_ptr.vmem [resolvable:$true] %s84
      %90 = dma.hbm_to_vmem [thread:$0]  %s8, 1024, %s85, [#allocation12], 64, 64, 4
    $region37: #{tpu_custom_call.1} parent=1 // pred_fallthru
      _
    // Predicated region
    $region38: #{tpu_custom_call.1} parent=1 // pred_check
      _
    $region39: #{tpu_custom_call.1} parent=1 // pred_check_branch
      %92 = sbr.rel (0) target = $region41
    $region40: #{tpu_custom_call.1} parent=1 // pred_region
      _
    $region41: #{tpu_custom_call.1} parent=1 // pred_fallthru
      _
    // Predicated region
    $region42: #{tpu_custom_call.1} parent=1 // pred_check
      _
    $region43: #{tpu_custom_call.1} parent=1 // pred_check_branch
      %94 = sbr.rel (0) target = $region45
    $region44: #{tpu_custom_call.1} parent=1 // pred_region
      _
    $region45: #{tpu_custom_call.1} parent=1 // pred_fallthru
      _
    // Predicated region
    $region46: #{tpu_custom_call.1} parent=1 // pred_check
      _
    $region47: #{tpu_custom_call.1} parent=1 // pred_check_branch
      %96 = sbr.rel (0) target = $region49
    $region48: #{tpu_custom_call.1} parent=1 // pred_region
      %s98 = ssub.s32 1024, 1024
      %99 = vsyncadd [#allocation15], %s98
      %s100 = sshll.u32 [#allocation14], 4
      %s101 = int_to_ptr.vmem [resolvable:$true] %s100
      %106 = dma.hbm_to_vmem [thread:$0]  %s11, 1024, %s101, [#allocation15], 64, 64, 4
    $region49: #{tpu_custom_call.1} parent=1 // pred_fallthru
      _
    // Predicated region
    $region50: #{tpu_custom_call.1} parent=1 // pred_check
      _
    $region51: #{tpu_custom_call.1} parent=1 // pred_check_branch
      %108 = sbr.rel (0) target = $region53
    $region52: #{tpu_custom_call.1} parent=1 // pred_region
      _
    $region53: #{tpu_custom_call.1} parent=1 // pred_fallthru
      _
    // Predicated region
    $region54: #{tpu_custom_call.1} parent=1 // pred_check
      _
    $region55: #{tpu_custom_call.1} parent=1 // pred_check_branch
      %110 = sbr.rel (0) target = $region57
    $region56: #{tpu_custom_call.1} parent=1 // pred_region
      %111 = dma.done [#allocation6], 384
    $region57: #{tpu_custom_call.1} parent=1 // pred_fallthru
      _
    // Predicated region
    $region58: #{tpu_custom_call.1} parent=1 // pred_check
      _
    $region59: #{tpu_custom_call.1} parent=1 // pred_check_branch
      %113 = sbr.rel (0) target = $region61
    $region60: #{tpu_custom_call.1} parent=1 // pred_region
      %114 = dma.done [#allocation9], 6144
    $region61: #{tpu_custom_call.1} parent=1 // pred_fallthru
      _
    // Predicated region
    $region62: #{tpu_custom_call.1} parent=1 // pred_check
      _
    $region63: #{tpu_custom_call.1} parent=1 // pred_check_branch
      %116 = sbr.rel (0) target = $region65
    $region64: #{tpu_custom_call.1} parent=1 // pred_region
      %117 = dma.done [#allocation9], 6144
    $region65: #{tpu_custom_call.1} parent=1 // pred_fallthru
      _
    // Predicated region
    $region66: #{tpu_custom_call.1} parent=1 // pred_check
      _
    $region67: #{tpu_custom_call.1} parent=1 // pred_check_branch
      %119 = sbr.rel (0) target = $region69
    $region68: #{tpu_custom_call.1} parent=1 // pred_region
      %120 = dma.done [#allocation12], 3072
    $region69: #{tpu_custom_call.1} parent=1 // pred_fallthru
      _
    // Predicated region
    $region70: #{tpu_custom_call.1} parent=1 // pred_check
      _
    $region71: #{tpu_custom_call.1} parent=1 // pred_check_branch
      %122 = sbr.rel (0) target = $region73
    $region72: #{tpu_custom_call.1} parent=1 // pred_region
      %123 = dma.done [#allocation12], 1024
    $region73: #{tpu_custom_call.1} parent=1 // pred_fallthru
      _
    // Predicated region
    $region74: #{tpu_custom_call.1} parent=1 // pred_check
      _
    $region75: #{tpu_custom_call.1} parent=1 // pred_check_branch
      %125 = sbr.rel (0) target = $region77
    $region76: #{tpu_custom_call.1} parent=1 // pred_region
      %126 = dma.done [#allocation15], 1024
    $region77: #{tpu_custom_call.1} parent=1 // pred_fallthru
      _
    %128 = vst [vmem:[#allocation2 + $0x10] sm:$0xff] 0.0
    %v129 = vld [vmem:[#allocation5] sm:$0xff]
    %v130 = vld [vmem:[#allocation5 + $0x8] sm:$0xff]
    %v131 = vld [vmem:[#allocation5 + $0x10] sm:$0xff]
    %132 = vst [vmem:[#allocation2] sm:$0xff] %v129
    %133 = vst [vmem:[#allocation2 + $0x8] sm:$0xff] %v130
    %vm134 = vcmask 441344
    %135 = vst.msk [vmem:[#allocation2 + $0x10] sm:$0xff] %vm134, %v131
    %v136 = vld [vmem:[#allocation2] sm:$0xff]
    %v137 = vld [vmem:[#allocation2 + $0x8] sm:$0xff]
    %v138 = vld [vmem:[#allocation2 + $0x10] sm:$0xff]
    %v139 = vpack.c.bf16 %v136, %v136
    %v140 = vpack.c.bf16 %v137, %v137
    %v141 = vpack.c.bf16 %v138, %v138
    %v142 = vld [vmem:[#allocation8] sm:$0xff]
    %v143 = vld [vmem:[#allocation8 + $0x8] sm:$0xff]
    %v144 = vld [vmem:[#allocation8 + $0x10] sm:$0xff]
    %v145 = vld [vmem:[#allocation8 + $0x18] sm:$0xff]
    %v146 = vld [vmem:[#allocation8 + $0x20] sm:$0xff]
    %v147 = vld [vmem:[#allocation8 + $0x28] sm:$0xff]
    %v148 = vld [vmem:[#allocation8 + $0x30] sm:$0xff]
    %v149 = vld [vmem:[#allocation8 + $0x38] sm:$0xff]
    %v150 = vld [vmem:[#allocation8 + $0x40] sm:$0xff]
    %v151 = vld [vmem:[#allocation8 + $0x48] sm:$0xff]
    %v152 = vld [vmem:[#allocation8 + $0x50] sm:$0xff]
    %v153 = vld [vmem:[#allocation8 + $0x58] sm:$0xff]
    %v154 = vld [vmem:[#allocation8 + $0x60] sm:$0xff]
    %v155 = vld [vmem:[#allocation8 + $0x68] sm:$0xff]
    %v156 = vld [vmem:[#allocation8 + $0x70] sm:$0xff]
    %v157 = vld [vmem:[#allocation8 + $0x78] sm:$0xff]
    %v158 = vld [vmem:[#allocation8 + $0x80] sm:$0xff]
    %v159 = vld [vmem:[#allocation8 + $0x88] sm:$0xff]
    %v160 = vld [vmem:[#allocation8 + $0x90] sm:$0xff]
    %v161 = vld [vmem:[#allocation8 + $0x98] sm:$0xff]
    %v162 = vld [vmem:[#allocation8 + $0xa0] sm:$0xff]
    %v163 = vld [vmem:[#allocation8 + $0xa8] sm:$0xff]
    %v164 = vld [vmem:[#allocation8 + $0xb0] sm:$0xff]
    %v165 = vld [vmem:[#allocation8 + $0xb8] sm:$0xff]
    %v166 = vld [vmem:[#allocation8 + $0xc0] sm:$0xff]
    %v167 = vld [vmem:[#allocation8 + $0xc8] sm:$0xff]
    %v168 = vld [vmem:[#allocation8 + $0xd0] sm:$0xff]
    %v169 = vld [vmem:[#allocation8 + $0xd8] sm:$0xff]
    %v170 = vld [vmem:[#allocation8 + $0xe0] sm:$0xff]
    %v171 = vld [vmem:[#allocation8 + $0xe8] sm:$0xff]
    %v172 = vld [vmem:[#allocation8 + $0xf0] sm:$0xff]
    %v173 = vld [vmem:[#allocation8 + $0xf8] sm:$0xff]
    %v174 = vld [vmem:[#allocation8 + $0x100] sm:$0xff]
    %v175 = vld [vmem:[#allocation8 + $0x108] sm:$0xff]
    %v176 = vld [vmem:[#allocation8 + $0x110] sm:$0xff]
    %v177 = vld [vmem:[#allocation8 + $0x118] sm:$0xff]
    %v178 = vld [vmem:[#allocation8 + $0x120] sm:$0xff]
    %v179 = vld [vmem:[#allocation8 + $0x128] sm:$0xff]
    %v180 = vld [vmem:[#allocation8 + $0x130] sm:$0xff]
    %v181 = vld [vmem:[#allocation8 + $0x138] sm:$0xff]
    %v182 = vld [vmem:[#allocation8 + $0x140] sm:$0xff]
    %v183 = vld [vmem:[#allocation8 + $0x148] sm:$0xff]
    %v184 = vld [vmem:[#allocation8 + $0x150] sm:$0xff]
    %v185 = vld [vmem:[#allocation8 + $0x158] sm:$0xff]
    %v186 = vld [vmem:[#allocation8 + $0x160] sm:$0xff]
    %v187 = vld [vmem:[#allocation8 + $0x168] sm:$0xff]
    %v188 = vld [vmem:[#allocation8 + $0x170] sm:$0xff]
    %v189 = vld [vmem:[#allocation8 + $0x178] sm:$0xff]
    %v190 = vld [vmem:[%s2] sm:$0x3]
    %v192 = vlaneseq
    %v193 = vshrl.u32 %v192, 7
    %v194 = vsub.s32 0, %v193
    %v195 = vrot.slane %v190, %v194
    %v196 = vlaneseq
    %v197 = vshrl.u32 %v196, 7
    %v198 = vsub.s32 1, %v197
    %v199 = vrot.slane %v190, %v198
    %v250 = vunpack.c.l.b16 %v142
    %v251 = vunpack.c.h.b16 %v142
    %v252 = vunpack.c.l.b16 %v143
    %v253 = vunpack.c.h.b16 %v143
    %v254 = vunpack.c.l.b16 %v144
    %v255 = vunpack.c.h.b16 %v144
    %v256 = vunpack.c.l.b16 %v145
    %v257 = vunpack.c.h.b16 %v145
    %v258 = vunpack.c.l.b16 %v146
    %v259 = vunpack.c.h.b16 %v146
    %v260 = vunpack.c.l.b16 %v147
    %v261 = vunpack.c.h.b16 %v147
    %v262 = vunpack.c.l.b16 %v148
    %v263 = vunpack.c.h.b16 %v148
    %v264 = vunpack.c.l.b16 %v149
    %v265 = vunpack.c.h.b16 %v149
    %v266 = vunpack.c.l.b16 %v150
    %v267 = vunpack.c.h.b16 %v150
    %v268 = vunpack.c.l.b16 %v151
    %v269 = vunpack.c.h.b16 %v151
    %v270 = vunpack.c.l.b16 %v152
    %v271 = vunpack.c.h.b16 %v152
    %v272 = vunpack.c.l.b16 %v153
    %v273 = vunpack.c.h.b16 %v153
    %v274 = vunpack.c.l.b16 %v154
    %v275 = vunpack.c.h.b16 %v154
    %v276 = vunpack.c.l.b16 %v155
    %v277 = vunpack.c.h.b16 %v155
    %v278 = vunpack.c.l.b16 %v156
    %v279 = vunpack.c.h.b16 %v156
    %v280 = vunpack.c.l.b16 %v157
    %v281 = vunpack.c.h.b16 %v157
    %v282 = vunpack.c.l.b16 %v158
    %v283 = vunpack.c.h.b16 %v158
    %v284 = vunpack.c.l.b16 %v159
    %v285 = vunpack.c.h.b16 %v159
    %v286 = vunpack.c.l.b16 %v160
    %v287 = vunpack.c.h.b16 %v160
    %v288 = vunpack.c.l.b16 %v161
    %v289 = vunpack.c.h.b16 %v161
    %v290 = vunpack.c.l.b16 %v162
    %v291 = vunpack.c.h.b16 %v162
    %v292 = vunpack.c.l.b16 %v163
    %v293 = vunpack.c.h.b16 %v163
    %v294 = vunpack.c.l.b16 %v164
    %v295 = vunpack.c.h.b16 %v164
    %v296 = vunpack.c.l.b16 %v165
    %v297 = vunpack.c.h.b16 %v165
    %v298 = vunpack.c.l.b16 %v166
    %v299 = vunpack.c.h.b16 %v166
    %v300 = vunpack.c.l.b16 %v167
    %v301 = vunpack.c.h.b16 %v167
    %v302 = vunpack.c.l.b16 %v168
    %v303 = vunpack.c.h.b16 %v168
    %v304 = vunpack.c.l.b16 %v169
    %v305 = vunpack.c.h.b16 %v169
    %v306 = vunpack.c.l.b16 %v170
    %v307 = vunpack.c.h.b16 %v170
    %v308 = vunpack.c.l.b16 %v171
    %v309 = vunpack.c.h.b16 %v171
    %v310 = vunpack.c.l.b16 %v172
    %v311 = vunpack.c.h.b16 %v172
    %v312 = vunpack.c.l.b16 %v173
    %v313 = vunpack.c.h.b16 %v173
    %v314 = vunpack.c.l.b16 %v174
    %v315 = vunpack.c.h.b16 %v174
    %v316 = vunpack.c.l.b16 %v175
    %v317 = vunpack.c.h.b16 %v175
    %v318 = vunpack.c.l.b16 %v176
    %v319 = vunpack.c.h.b16 %v176
    %v320 = vunpack.c.l.b16 %v177
    %v321 = vunpack.c.h.b16 %v177
    %v322 = vunpack.c.l.b16 %v178
    %v323 = vunpack.c.h.b16 %v178
    %v324 = vunpack.c.l.b16 %v179
    %v325 = vunpack.c.h.b16 %v179
    %v326 = vunpack.c.l.b16 %v180
    %v327 = vunpack.c.h.b16 %v180
    %v328 = vunpack.c.l.b16 %v181
    %v329 = vunpack.c.h.b16 %v181
    %v330 = vunpack.c.l.b16 %v182
    %v331 = vunpack.c.h.b16 %v182
    %v332 = vunpack.c.l.b16 %v183
    %v333 = vunpack.c.h.b16 %v183
    %v334 = vunpack.c.l.b16 %v184
    %v335 = vunpack.c.h.b16 %v184
    %v336 = vunpack.c.l.b16 %v185
    %v337 = vunpack.c.h.b16 %v185
    %v338 = vunpack.c.l.b16 %v186
    %v339 = vunpack.c.h.b16 %v186
    %v340 = vunpack.c.l.b16 %v187
    %v341 = vunpack.c.h.b16 %v187
    %v342 = vunpack.c.l.b16 %v188
    %v343 = vunpack.c.h.b16 %v188
    %v344 = vunpack.c.l.b16 %v189
    %v345 = vunpack.c.h.b16 %v189
    %v346 = vpack.c.b16 %v252, %v250
    %v347 = vpack.c.b16 %v253, %v251
    %v348 = vpack.c.b16 %v256, %v254
    %v349 = vpack.c.b16 %v257, %v255
    %v350 = vpack.c.b16 %v260, %v258
    %v351 = vpack.c.b16 %v261, %v259
    %v352 = vpack.c.b16 %v264, %v262
    %v353 = vpack.c.b16 %v265, %v263
    %v354 = vpack.c.b16 %v268, %v266
    %v355 = vpack.c.b16 %v269, %v267
    %v356 = vpack.c.b16 %v272, %v270
    %v357 = vpack.c.b16 %v273, %v271
    %v358 = vpack.c.b16 %v276, %v274
    %v359 = vpack.c.b16 %v277, %v275
    %v360 = vpack.c.b16 %v280, %v278
    %v361 = vpack.c.b16 %v281, %v279
    %v362 = vpack.c.b16 %v284, %v282
    %v363 = vpack.c.b16 %v285, %v283
    %v364 = vpack.c.b16 %v288, %v286
    %v365 = vpack.c.b16 %v289, %v287
    %v366 = vpack.c.b16 %v292, %v290
    %v367 = vpack.c.b16 %v293, %v291
    %v368 = vpack.c.b16 %v296, %v294
    %v369 = vpack.c.b16 %v297, %v295
    %v370 = vpack.c.b16 %v300, %v298
    %v371 = vpack.c.b16 %v301, %v299
    %v372 = vpack.c.b16 %v304, %v302
    %v373 = vpack.c.b16 %v305, %v303
    %v374 = vpack.c.b16 %v308, %v306
    %v375 = vpack.c.b16 %v309, %v307
    %v376 = vpack.c.b16 %v312, %v310
    %v377 = vpack.c.b16 %v313, %v311
    %v378 = vpack.c.b16 %v316, %v314
    %v379 = vpack.c.b16 %v317, %v315
    %v380 = vpack.c.b16 %v320, %v318
    %v381 = vpack.c.b16 %v321, %v319
    %v382 = vpack.c.b16 %v324, %v322
    %v383 = vpack.c.b16 %v325, %v323
    %v384 = vpack.c.b16 %v328, %v326
    %v385 = vpack.c.b16 %v329, %v327
    %v386 = vpack.c.b16 %v332, %v330
    %v387 = vpack.c.b16 %v333, %v331
    %v388 = vpack.c.b16 %v336, %v334
    %v389 = vpack.c.b16 %v337, %v335
    %v390 = vpack.c.b16 %v340, %v338
    %v391 = vpack.c.b16 %v341, %v339
    %v392 = vpack.c.b16 %v344, %v342
    %v393 = vpack.c.b16 %v345, %v343
    %442 = vmatprep.subr.bf16.mxu0 %v361
    %443 = vmatpush1.bf16.msra.mxu0 %v360
    %444 = vmatprep.subr.bf16.mxu0 %v359
    %445 = vmatpush1.bf16.msra.mxu0 %v358
    %446 = vmatprep.subr.bf16.mxu0 %v357
    %447 = vmatpush1.bf16.msra.mxu0 %v356
    %448 = vmatprep.subr.bf16.mxu0 %v355
    %449 = vmatpush1.bf16.msra.mxu0 %v354
    %450 = vmatprep.subr.bf16.mxu0 %v353
    %451 = vmatpush1.bf16.msra.mxu0 %v352
    %452 = vmatprep.subr.bf16.mxu0 %v351
    %453 = vmatpush1.bf16.msra.mxu0 %v350
    %454 = vmatprep.subr.bf16.mxu0 %v349
    %455 = vmatpush1.bf16.msra.mxu0 %v348
    %456 = vmatprep.subr.bf16.mxu0 %v347
    %457 = vmatpush1.bf16.msra.mxu0 %v346
    %458 = vmatprep.subr.bf16.mxu0 %v377
    %459 = vmatpush2.bf16.msra.mxu0 %v376
    %460 = vmatprep.subr.bf16.mxu0 %v375
    %461 = vmatpush2.bf16.msra.mxu0 %v374
    %462 = vmatprep.subr.bf16.mxu0 %v373
    %463 = vmatpush2.bf16.msra.mxu0 %v372
    %464 = vmatprep.subr.bf16.mxu0 %v371
    %465 = vmatpush2.bf16.msra.mxu0 %v370
    %466 = vmatprep.subr.bf16.mxu0 %v369
    %467 = vmatpush2.bf16.msra.mxu0 %v368
    %468 = vmatprep.subr.bf16.mxu0 %v367
    %469 = vmatpush2.bf16.msra.mxu0 %v366
    %470 = vmatprep.subr.bf16.mxu0 %v365
    %471 = vmatpush2.bf16.msra.mxu0 %v364
    %472 = vmatprep.subr.bf16.mxu0 %v363
    %473 = vmatpush2.bf16.msra.mxu0 %v362
    %474 = vmatprep.mubr.bf16.mxu0 %v140
    %475 = vmatmul.mubr.bf16.gmra.mxu0 %v139
    %v476 = vpop.f32.mrf.mxu0
    %v477 = vadd.f32 %v195, %v476
    %v478 = vpop.f32.mrf.mxu0
    %v479 = vadd.f32 %v199, %v478
    %v480 = vpop.f32.mrf.mxu0
    %v481 = vpop.f32.mrf.mxu0
    %482 = vdwg.mxu0
    %483 = vmatprep.subr.bf16.mxu0 %v393
    %484 = vmatpush1.bf16.msra.mxu0 %v392
    %485 = vmatprep.subr.bf16.mxu0 %v391
    %486 = vmatpush1.bf16.msra.mxu0 %v390
    %487 = vmatprep.subr.bf16.mxu0 %v389
    %488 = vmatpush1.bf16.msra.mxu0 %v388
    %489 = vmatprep.subr.bf16.mxu0 %v387
    %490 = vmatpush1.bf16.msra.mxu0 %v386
    %491 = vmatprep.subr.bf16.mxu0 %v385
    %492 = vmatpush1.bf16.msra.mxu0 %v384
    %493 = vmatprep.subr.bf16.mxu0 %v383
    %494 = vmatpush1.bf16.msra.mxu0 %v382
    %495 = vmatprep.subr.bf16.mxu0 %v381
    %496 = vmatpush1.bf16.msra.mxu0 %v380
    %497 = vmatprep.subr.bf16.mxu0 %v379
    %498 = vmatpush1.bf16.msra.mxu0 %v378
    %499 = vmatprep.subr.bf16.mxu0 0
    %500 = vmatpush2.bf16.msra.mxu0 0
    %501 = vmatprep.subr.bf16.mxu0 0
    %502 = vmatpush2.bf16.msra.mxu0 0
    %503 = vmatprep.subr.bf16.mxu0 0
    %504 = vmatpush2.bf16.msra.mxu0 0
    %505 = vmatprep.subr.bf16.mxu0 0
    %506 = vmatpush2.bf16.msra.mxu0 0
    %507 = vmatprep.subr.bf16.mxu0 0
    %508 = vmatpush2.bf16.msra.mxu0 0
    %509 = vmatprep.subr.bf16.mxu0 0
    %510 = vmatpush2.bf16.msra.mxu0 0
    %511 = vmatprep.subr.bf16.mxu0 0
    %512 = vmatpush2.bf16.msra.mxu0 0
    %513 = vmatprep.subr.bf16.mxu0 0
    %514 = vmatpush2.bf16.msra.mxu0 0
    %515 = vmatprep.mubr.bf16.mxu0 0
    %516 = vmatmul.mubr.bf16.gmra.mxu0 %v141
    %v517 = vpop.f32.mrf.mxu0
    %v518 = vadd.f32 %v477, %v517
    %v519 = vpop.f32.mrf.mxu0
    %v520 = vadd.f32 %v479, %v519
    %v521 = vpop.f32.mrf.mxu0
    %v522 = vpop.f32.mrf.mxu0
    %523 = vdwg.mxu0
    %v524 = vmax.f32 %v518, 0.0
    %v525 = vmax.f32 %v520, 0.0
    %v526 = vpack.c.bf16 %v524, %v524
    %v527 = vpack.c.bf16 %v525, %v525
    %v528 = vld [vmem:[#allocation10] sm:$0xff]
    %v529 = vld [vmem:[#allocation10 + $0x8] sm:$0xf]
    %v530 = vld [vmem:[#allocation10 + $0xc] sm:$0xff]
    %v531 = vld [vmem:[#allocation10 + $0x14] sm:$0xf]
    %v532 = vld [vmem:[#allocation10 + $0x18] sm:$0xff]
    %v533 = vld [vmem:[#allocation10 + $0x20] sm:$0xf]
    %v534 = vld [vmem:[#allocation10 + $0x24] sm:$0xff]
    %v535 = vld [vmem:[#allocation10 + $0x2c] sm:$0xf]
    %v536 = vld [vmem:[#allocation10 + $0x30] sm:$0xff]
    %v537 = vld [vmem:[#allocation10 + $0x38] sm:$0xf]
    %v538 = vld [vmem:[#allocation10 + $0x3c] sm:$0xff]
    %v539 = vld [vmem:[#allocation10 + $0x44] sm:$0xf]
    %v540 = vld [vmem:[#allocation10 + $0x48] sm:$0xff]
    %v541 = vld [vmem:[#allocation10 + $0x50] sm:$0xf]
    %v542 = vld [vmem:[#allocation10 + $0x54] sm:$0xff]
    %v543 = vld [vmem:[#allocation10 + $0x5c] sm:$0xf]
    %v544 = vld [vmem:[#allocation10 + $0x60] sm:$0xff]
    %v545 = vld [vmem:[#allocation10 + $0x68] sm:$0xf]
    %v546 = vld [vmem:[#allocation10 + $0x6c] sm:$0xff]
    %v547 = vld [vmem:[#allocation10 + $0x74] sm:$0xf]
    %v548 = vld [vmem:[#allocation10 + $0x78] sm:$0xff]
    %v549 = vld [vmem:[#allocation10 + $0x80] sm:$0xf]
    %v550 = vld [vmem:[#allocation10 + $0x84] sm:$0xff]
    %v551 = vld [vmem:[#allocation10 + $0x8c] sm:$0xf]
    %v552 = vld [vmem:[#allocation10 + $0x90] sm:$0xff]
    %v553 = vld [vmem:[#allocation10 + $0x98] sm:$0xf]
    %v554 = vld [vmem:[#allocation10 + $0x9c] sm:$0xff]
    %v555 = vld [vmem:[#allocation10 + $0xa4] sm:$0xf]
    %v556 = vld [vmem:[#allocation10 + $0xa8] sm:$0xff]
    %v557 = vld [vmem:[#allocation10 + $0xb0] sm:$0xf]
    %v558 = vld [vmem:[#allocation10 + $0xb4] sm:$0xff]
    %v559 = vld [vmem:[#allocation10 + $0xbc] sm:$0xf]
    %v560 = vld [vmem:[#allocation10 + $0xc0] sm:$0xff]
    %v561 = vld [vmem:[#allocation10 + $0xc8] sm:$0xf]
    %v562 = vld [vmem:[#allocation10 + $0xcc] sm:$0xff]
    %v563 = vld [vmem:[#allocation10 + $0xd4] sm:$0xf]
    %v564 = vld [vmem:[#allocation10 + $0xd8] sm:$0xff]
    %v565 = vld [vmem:[#allocation10 + $0xe0] sm:$0xf]
    %v566 = vld [vmem:[#allocation10 + $0xe4] sm:$0xff]
    %v567 = vld [vmem:[#allocation10 + $0xec] sm:$0xf]
    %v568 = vld [vmem:[#allocation10 + $0xf0] sm:$0xff]
    %v569 = vld [vmem:[#allocation10 + $0xf8] sm:$0xf]
    %v570 = vld [vmem:[#allocation10 + $0xfc] sm:$0xff]
    %v571 = vld [vmem:[#allocation10 + $0x104] sm:$0xf]
    %v572 = vld [vmem:[#allocation10 + $0x108] sm:$0xff]
    %v573 = vld [vmem:[#allocation10 + $0x110] sm:$0xf]
    %v574 = vld [vmem:[#allocation10 + $0x114] sm:$0xff]
    %v575 = vld [vmem:[#allocation10 + $0x11c] sm:$0xf]
    %v576 = vld [vmem:[#allocation10 + $0x120] sm:$0xff]
    %v577 = vld [vmem:[#allocation10 + $0x128] sm:$0xf]
    %v578 = vld [vmem:[#allocation10 + $0x12c] sm:$0xff]
    %v579 = vld [vmem:[#allocation10 + $0x134] sm:$0xf]
    %v580 = vld [vmem:[#allocation10 + $0x138] sm:$0xff]
    %v581 = vld [vmem:[#allocation10 + $0x140] sm:$0xf]
    %v582 = vld [vmem:[#allocation10 + $0x144] sm:$0xff]
    %v583 = vld [vmem:[#allocation10 + $0x14c] sm:$0xf]
    %v584 = vld [vmem:[#allocation10 + $0x150] sm:$0xff]
    %v585 = vld [vmem:[#allocation10 + $0x158] sm:$0xf]
    %v586 = vld [vmem:[#allocation10 + $0x15c] sm:$0xff]
    %v587 = vld [vmem:[#allocation10 + $0x164] sm:$0xf]
    %v588 = vld [vmem:[#allocation10 + $0x168] sm:$0xff]
    %v589 = vld [vmem:[#allocation10 + $0x170] sm:$0xf]
    %v590 = vld [vmem:[#allocation10 + $0x174] sm:$0xff]
    %v591 = vld [vmem:[#allocation10 + $0x17c] sm:$0xf]
    %v592 = vld [vmem:[%s4] sm:$0x7]
    %v594 = vlaneseq
    %v595 = vshrl.u32 %v594, 7
    %v596 = vsub.s32 0, %v595
    %v597 = vrot.slane %v592, %v596
    %v598 = vlaneseq
    %v599 = vshrl.u32 %v598, 7
    %v600 = vsub.s32 1, %v599
    %v601 = vrot.slane %v592, %v600
    %v602 = vlaneseq
    %v603 = vshrl.u32 %v602, 7
    %v604 = vsub.s32 2, %v603
    %v605 = vrot.slane %v592, %v604
    %v673 = vunpack.c.l.b16 %v528
    %v674 = vunpack.c.h.b16 %v528
    %v675 = vunpack.c.l.b16 %v529
    %v676 = vunpack.c.l.b16 %v530
    %v677 = vunpack.c.h.b16 %v530
    %v678 = vunpack.c.l.b16 %v531
    %v679 = vunpack.c.l.b16 %v532
    %v680 = vunpack.c.h.b16 %v532
    %v681 = vunpack.c.l.b16 %v533
    %v682 = vunpack.c.l.b16 %v534
    %v683 = vunpack.c.h.b16 %v534
    %v684 = vunpack.c.l.b16 %v535
    %v685 = vunpack.c.l.b16 %v536
    %v686 = vunpack.c.h.b16 %v536
    %v687 = vunpack.c.l.b16 %v537
    %v688 = vunpack.c.l.b16 %v538
    %v689 = vunpack.c.h.b16 %v538
    %v690 = vunpack.c.l.b16 %v539
    %v691 = vunpack.c.l.b16 %v540
    %v692 = vunpack.c.h.b16 %v540
    %v693 = vunpack.c.l.b16 %v541
    %v694 = vunpack.c.l.b16 %v542
    %v695 = vunpack.c.h.b16 %v542
    %v696 = vunpack.c.l.b16 %v543
    %v697 = vunpack.c.l.b16 %v544
    %v698 = vunpack.c.h.b16 %v544
    %v699 = vunpack.c.l.b16 %v545
    %v700 = vunpack.c.l.b16 %v546
    %v701 = vunpack.c.h.b16 %v546
    %v702 = vunpack.c.l.b16 %v547
    %v703 = vunpack.c.l.b16 %v548
    %v704 = vunpack.c.h.b16 %v548
    %v705 = vunpack.c.l.b16 %v549
    %v706 = vunpack.c.l.b16 %v550
    %v707 = vunpack.c.h.b16 %v550
    %v708 = vunpack.c.l.b16 %v551
    %v709 = vunpack.c.l.b16 %v552
    %v710 = vunpack.c.h.b16 %v552
    %v711 = vunpack.c.l.b16 %v553
    %v712 = vunpack.c.l.b16 %v554
    %v713 = vunpack.c.h.b16 %v554
    %v714 = vunpack.c.l.b16 %v555
    %v715 = vunpack.c.l.b16 %v556
    %v716 = vunpack.c.h.b16 %v556
    %v717 = vunpack.c.l.b16 %v557
    %v718 = vunpack.c.l.b16 %v558
    %v719 = vunpack.c.h.b16 %v558
    %v720 = vunpack.c.l.b16 %v559
    %v721 = vunpack.c.l.b16 %v560
    %v722 = vunpack.c.h.b16 %v560
    %v723 = vunpack.c.l.b16 %v561
    %v724 = vunpack.c.l.b16 %v562
    %v725 = vunpack.c.h.b16 %v562
    %v726 = vunpack.c.l.b16 %v563
    %v727 = vunpack.c.l.b16 %v564
    %v728 = vunpack.c.h.b16 %v564
    %v729 = vunpack.c.l.b16 %v565
    %v730 = vunpack.c.l.b16 %v566
    %v731 = vunpack.c.h.b16 %v566
    %v732 = vunpack.c.l.b16 %v567
    %v733 = vunpack.c.l.b16 %v568
    %v734 = vunpack.c.h.b16 %v568
    %v735 = vunpack.c.l.b16 %v569
    %v736 = vunpack.c.l.b16 %v570
    %v737 = vunpack.c.h.b16 %v570
    %v738 = vunpack.c.l.b16 %v571
    %v739 = vunpack.c.l.b16 %v572
    %v740 = vunpack.c.h.b16 %v572
    %v741 = vunpack.c.l.b16 %v573
    %v742 = vunpack.c.l.b16 %v574
    %v743 = vunpack.c.h.b16 %v574
    %v744 = vunpack.c.l.b16 %v575
    %v745 = vunpack.c.l.b16 %v576
    %v746 = vunpack.c.h.b16 %v576
    %v747 = vunpack.c.l.b16 %v577
    %v748 = vunpack.c.l.b16 %v578
    %v749 = vunpack.c.h.b16 %v578
    %v750 = vunpack.c.l.b16 %v579
    %v751 = vunpack.c.l.b16 %v580
    %v752 = vunpack.c.h.b16 %v580
    %v753 = vunpack.c.l.b16 %v581
    %v754 = vunpack.c.l.b16 %v582
    %v755 = vunpack.c.h.b16 %v582
    %v756 = vunpack.c.l.b16 %v583
    %v757 = vunpack.c.l.b16 %v584
    %v758 = vunpack.c.h.b16 %v584
    %v759 = vunpack.c.l.b16 %v585
    %v760 = vunpack.c.l.b16 %v586
    %v761 = vunpack.c.h.b16 %v586
    %v762 = vunpack.c.l.b16 %v587
    %v763 = vunpack.c.l.b16 %v588
    %v764 = vunpack.c.h.b16 %v588
    %v765 = vunpack.c.l.b16 %v589
    %v766 = vunpack.c.l.b16 %v590
    %v767 = vunpack.c.h.b16 %v590
    %v768 = vunpack.c.l.b16 %v591
    %v769 = vpack.c.b16 %v676, %v673
    %v770 = vpack.c.b16 %v677, %v674
    %v771 = vpack.c.b16 %v678, %v675
    %v772 = vpack.c.b16 %v682, %v679
    %v773 = vpack.c.b16 %v683, %v680
    %v774 = vpack.c.b16 %v684, %v681
    %v775 = vpack.c.b16 %v688, %v685
    %v776 = vpack.c.b16 %v689, %v686
    %v777 = vpack.c.b16 %v690, %v687
    %v778 = vpack.c.b16 %v694, %v691
    %v779 = vpack.c.b16 %v695, %v692
    %v780 = vpack.c.b16 %v696, %v693
    %v781 = vpack.c.b16 %v700, %v697
    %v782 = vpack.c.b16 %v701, %v698
    %v783 = vpack.c.b16 %v702, %v699
    %v784 = vpack.c.b16 %v706, %v703
    %v785 = vpack.c.b16 %v707, %v704
    %v786 = vpack.c.b16 %v708, %v705
    %v787 = vpack.c.b16 %v712, %v709
    %v788 = vpack.c.b16 %v713, %v710
    %v789 = vpack.c.b16 %v714, %v711
    %v790 = vpack.c.b16 %v718, %v715
    %v791 = vpack.c.b16 %v719, %v716
    %v792 = vpack.c.b16 %v720, %v717
    %v793 = vpack.c.b16 %v724, %v721
    %v794 = vpack.c.b16 %v725, %v722
    %v795 = vpack.c.b16 %v726, %v723
    %v796 = vpack.c.b16 %v730, %v727
    %v797 = vpack.c.b16 %v731, %v728
    %v798 = vpack.c.b16 %v732, %v729
    %v799 = vpack.c.b16 %v736, %v733
    %v800 = vpack.c.b16 %v737, %v734
    %v801 = vpack.c.b16 %v738, %v735
    %v802 = vpack.c.b16 %v742, %v739
    %v803 = vpack.c.b16 %v743, %v740
    %v804 = vpack.c.b16 %v744, %v741
    %v805 = vpack.c.b16 %v748, %v745
    %v806 = vpack.c.b16 %v749, %v746
    %v807 = vpack.c.b16 %v750, %v747
    %v808 = vpack.c.b16 %v754, %v751
    %v809 = vpack.c.b16 %v755, %v752
    %v810 = vpack.c.b16 %v756, %v753
    %v811 = vpack.c.b16 %v760, %v757
    %v812 = vpack.c.b16 %v761, %v758
    %v813 = vpack.c.b16 %v762, %v759
    %v814 = vpack.c.b16 %v766, %v763
    %v815 = vpack.c.b16 %v767, %v764
    %v816 = vpack.c.b16 %v768, %v765
    %865 = vmatprep.subr.bf16.mxu0 %v791
    %866 = vmatpush1.bf16.msra.mxu0 %v790
    %867 = vmatprep.subr.bf16.mxu0 %v788
    %868 = vmatpush1.bf16.msra.mxu0 %v787
    %869 = vmatprep.subr.bf16.mxu0 %v785
    %870 = vmatpush1.bf16.msra.mxu0 %v784
    %871 = vmatprep.subr.bf16.mxu0 %v782
    %872 = vmatpush1.bf16.msra.mxu0 %v781
    %873 = vmatprep.subr.bf16.mxu0 %v779
    %874 = vmatpush1.bf16.msra.mxu0 %v778
    %875 = vmatprep.subr.bf16.mxu0 %v776
    %876 = vmatpush1.bf16.msra.mxu0 %v775
    %877 = vmatprep.subr.bf16.mxu0 %v773
    %878 = vmatpush1.bf16.msra.mxu0 %v772
    %879 = vmatprep.subr.bf16.mxu0 %v770
    %880 = vmatpush1.bf16.msra.mxu0 %v769
    %881 = vmatprep.subr.bf16.mxu0 %v815
    %882 = vmatpush2.bf16.msra.mxu0 %v814
    %883 = vmatprep.subr.bf16.mxu0 %v812
    %884 = vmatpush2.bf16.msra.mxu0 %v811
    %885 = vmatprep.subr.bf16.mxu0 %v809
    %886 = vmatpush2.bf16.msra.mxu0 %v808
    %887 = vmatprep.subr.bf16.mxu0 %v806
    %888 = vmatpush2.bf16.msra.mxu0 %v805
    %889 = vmatprep.subr.bf16.mxu0 %v803
    %890 = vmatpush2.bf16.msra.mxu0 %v802
    %891 = vmatprep.subr.bf16.mxu0 %v800
    %892 = vmatpush2.bf16.msra.mxu0 %v799
    %893 = vmatprep.subr.bf16.mxu0 %v797
    %894 = vmatpush2.bf16.msra.mxu0 %v796
    %895 = vmatprep.subr.bf16.mxu0 %v794
    %896 = vmatpush2.bf16.msra.mxu0 %v793
    %897 = vmatprep.mubr.bf16.mxu0 %v527
    %898 = vmatmul.mubr.bf16.gmra.mxu0 %v526
    %v899 = vpop.f32.mrf.mxu0
    %v900 = vadd.f32 %v597, %v899
    %v901 = vpop.f32.mrf.mxu0
    %v902 = vadd.f32 %v601, %v901
    %v903 = vpop.f32.mrf.mxu0
    %v904 = vpop.f32.mrf.mxu0
    %905 = vdwg.mxu0
    %906 = vmatprep.subr.bf16.mxu0 0
    %907 = vmatpush1.bf16.msra.mxu0 %v792
    %908 = vmatprep.subr.bf16.mxu0 0
    %909 = vmatpush1.bf16.msra.mxu0 %v789
    %910 = vmatprep.subr.bf16.mxu0 0
    %911 = vmatpush1.bf16.msra.mxu0 %v786
    %912 = vmatprep.subr.bf16.mxu0 0
    %913 = vmatpush1.bf16.msra.mxu0 %v783
    %914 = vmatprep.subr.bf16.mxu0 0
    %915 = vmatpush1.bf16.msra.mxu0 %v780
    %916 = vmatprep.subr.bf16.mxu0 0
    %917 = vmatpush1.bf16.msra.mxu0 %v777
    %918 = vmatprep.subr.bf16.mxu0 0
    %919 = vmatpush1.bf16.msra.mxu0 %v774
    %920 = vmatprep.subr.bf16.mxu0 0
    %921 = vmatpush1.bf16.msra.mxu0 %v771
    %922 = vmatprep.subr.bf16.mxu0 0
    %923 = vmatpush2.bf16.msra.mxu0 %v816
    %924 = vmatprep.subr.bf16.mxu0 0
    %925 = vmatpush2.bf16.msra.mxu0 %v813
    %926 = vmatprep.subr.bf16.mxu0 0
    %927 = vmatpush2.bf16.msra.mxu0 %v810
    %928 = vmatprep.subr.bf16.mxu0 0
    %929 = vmatpush2.bf16.msra.mxu0 %v807
    %930 = vmatprep.subr.bf16.mxu0 0
    %931 = vmatpush2.bf16.msra.mxu0 %v804
    %932 = vmatprep.subr.bf16.mxu0 0
    %933 = vmatpush2.bf16.msra.mxu0 %v801
    %934 = vmatprep.subr.bf16.mxu0 0
    %935 = vmatpush2.bf16.msra.mxu0 %v798
    %936 = vmatprep.subr.bf16.mxu0 0
    %937 = vmatpush2.bf16.msra.mxu0 %v795
    %938 = vmatprep.mubr.bf16.mxu0 %v527
    %939 = vmatmul.mubr.bf16.gmra.mxu0 %v526
    %v940 = vpop.f32.mrf.mxu0
    %v941 = vadd.f32 %v605, %v940
    %v942 = vpop.f32.mrf.mxu0
    %v943 = vpop.f32.mrf.mxu0
    %v944 = vpop.f32.mrf.mxu0
    %945 = vdwg.mxu0
    %v946 = vmul.f32 %v900, 0.5
    %v947 = vmul.f32 %v902, 0.5
    %v948 = vmul.f32 %v941, 0.5
    %v949 = vtanh.pop %v946
    %v950 = vtanh.pop %v947
    %v951 = vtanh.pop %v948
    %v952 = vmul.f32 %v949, 0.5
    %v953 = vmul.f32 %v950, 0.5
    %v954 = vmul.f32 %v951, 0.5
    %v955 = vadd.f32 %v952, 0.5
    %v956 = vadd.f32 %v953, 0.5
    %v957 = vadd.f32 %v954, 0.5
    %v958 = vmul.f32 %v955, %v136
    %v959 = vmul.f32 %v956, %v137
    %v960 = vmul.f32 %v957, %v138
    %v961 = vpack.c.bf16 %v958, %v958
    %v962 = vpack.c.bf16 %v959, %v959
    %v963 = vpack.c.bf16 %v960, %v960
    %v964 = vld [vmem:[#allocation11] sm:$0xf]
    %v965 = vld [vmem:[#allocation11 + $0x4] sm:$0xf]
    %v966 = vld [vmem:[#allocation11 + $0x8] sm:$0xf]
    %v967 = vld [vmem:[#allocation11 + $0xc] sm:$0xf]
    %v968 = vld [vmem:[#allocation11 + $0x10] sm:$0xf]
    %v969 = vld [vmem:[#allocation11 + $0x14] sm:$0xf]
    %v970 = vld [vmem:[#allocation11 + $0x18] sm:$0xf]
    %v971 = vld [vmem:[#allocation11 + $0x1c] sm:$0xf]
    %v972 = vld [vmem:[#allocation11 + $0x20] sm:$0xf]
    %v973 = vld [vmem:[#allocation11 + $0x24] sm:$0xf]
    %v974 = vld [vmem:[#allocation11 + $0x28] sm:$0xf]
    %v975 = vld [vmem:[#allocation11 + $0x2c] sm:$0xf]
    %v976 = vld [vmem:[#allocation11 + $0x30] sm:$0xf]
    %v977 = vld [vmem:[#allocation11 + $0x34] sm:$0xf]
    %v978 = vld [vmem:[#allocation11 + $0x38] sm:$0xf]
    %v979 = vld [vmem:[#allocation11 + $0x3c] sm:$0xf]
    %v980 = vld [vmem:[#allocation11 + $0x40] sm:$0xf]
    %v981 = vld [vmem:[#allocation11 + $0x44] sm:$0xf]
    %v982 = vld [vmem:[#allocation11 + $0x48] sm:$0xf]
    %v983 = vld [vmem:[#allocation11 + $0x4c] sm:$0xf]
    %v984 = vld [vmem:[#allocation11 + $0x50] sm:$0xf]
    %v985 = vld [vmem:[#allocation11 + $0x54] sm:$0xf]
    %v986 = vld [vmem:[#allocation11 + $0x58] sm:$0xf]
    %v987 = vld [vmem:[#allocation11 + $0x5c] sm:$0xf]
    %v988 = vld [vmem:[#allocation11 + $0x60] sm:$0xf]
    %v989 = vld [vmem:[#allocation11 + $0x64] sm:$0xf]
    %v990 = vld [vmem:[#allocation11 + $0x68] sm:$0xf]
    %v991 = vld [vmem:[#allocation11 + $0x6c] sm:$0xf]
    %v992 = vld [vmem:[#allocation11 + $0x70] sm:$0xf]
    %v993 = vld [vmem:[#allocation11 + $0x74] sm:$0xf]
    %v994 = vld [vmem:[#allocation11 + $0x78] sm:$0xf]
    %v995 = vld [vmem:[#allocation11 + $0x7c] sm:$0xf]
    %v996 = vld [vmem:[#allocation11 + $0x80] sm:$0xf]
    %v997 = vld [vmem:[#allocation11 + $0x84] sm:$0xf]
    %v998 = vld [vmem:[#allocation11 + $0x88] sm:$0xf]
    %v999 = vld [vmem:[#allocation11 + $0x8c] sm:$0xf]
    %v1000 = vld [vmem:[#allocation11 + $0x90] sm:$0xf]
    %v1001 = vld [vmem:[#allocation11 + $0x94] sm:$0xf]
    %v1002 = vld [vmem:[#allocation11 + $0x98] sm:$0xf]
    %v1003 = vld [vmem:[#allocation11 + $0x9c] sm:$0xf]
    %v1004 = vld [vmem:[#allocation11 + $0xa0] sm:$0xf]
    %v1005 = vld [vmem:[#allocation11 + $0xa4] sm:$0xf]
    %v1006 = vld [vmem:[#allocation11 + $0xa8] sm:$0xf]
    %v1007 = vld [vmem:[#allocation11 + $0xac] sm:$0xf]
    %v1008 = vld [vmem:[#allocation11 + $0xb0] sm:$0xf]
    %v1009 = vld [vmem:[#allocation11 + $0xb4] sm:$0xf]
    %v1010 = vld [vmem:[#allocation11 + $0xb8] sm:$0xf]
    %v1011 = vld [vmem:[#allocation11 + $0xbc] sm:$0xf]
    %v1012 = vld [vmem:[%s6] sm:$0x1]
    %v1014 = vlaneseq
    %v1015 = vshrl.u32 %v1014, 7
    %v1016 = vsub.s32 0, %v1015
    %v1017 = vrot.slane %v1012, %v1016
    %v1067 = vunpack.c.l.b16 %v964
    %v1068 = vunpack.c.l.b16 %v965
    %v1069 = vunpack.c.l.b16 %v966
    %v1070 = vunpack.c.l.b16 %v967
    %v1071 = vunpack.c.l.b16 %v968
    %v1072 = vunpack.c.l.b16 %v969
    %v1073 = vunpack.c.l.b16 %v970
    %v1074 = vunpack.c.l.b16 %v971
    %v1075 = vunpack.c.l.b16 %v972
    %v1076 = vunpack.c.l.b16 %v973
    %v1077 = vunpack.c.l.b16 %v974
    %v1078 = vunpack.c.l.b16 %v975
    %v1079 = vunpack.c.l.b16 %v976
    %v1080 = vunpack.c.l.b16 %v977
    %v1081 = vunpack.c.l.b16 %v978
    %v1082 = vunpack.c.l.b16 %v979
    %v1083 = vunpack.c.l.b16 %v980
    %v1084 = vunpack.c.l.b16 %v981
    %v1085 = vunpack.c.l.b16 %v982
    %v1086 = vunpack.c.l.b16 %v983
    %v1087 = vunpack.c.l.b16 %v984
    %v1088 = vunpack.c.l.b16 %v985
    %v1089 = vunpack.c.l.b16 %v986
    %v1090 = vunpack.c.l.b16 %v987
    %v1091 = vunpack.c.l.b16 %v988
    %v1092 = vunpack.c.l.b16 %v989
    %v1093 = vunpack.c.l.b16 %v990
    %v1094 = vunpack.c.l.b16 %v991
    %v1095 = vunpack.c.l.b16 %v992
    %v1096 = vunpack.c.l.b16 %v993
    %v1097 = vunpack.c.l.b16 %v994
    %v1098 = vunpack.c.l.b16 %v995
    %v1099 = vunpack.c.l.b16 %v996
    %v1100 = vunpack.c.l.b16 %v997
    %v1101 = vunpack.c.l.b16 %v998
    %v1102 = vunpack.c.l.b16 %v999
    %v1103 = vunpack.c.l.b16 %v1000
    %v1104 = vunpack.c.l.b16 %v1001
    %v1105 = vunpack.c.l.b16 %v1002
    %v1106 = vunpack.c.l.b16 %v1003
    %v1107 = vunpack.c.l.b16 %v1004
    %v1108 = vunpack.c.l.b16 %v1005
    %v1109 = vunpack.c.l.b16 %v1006
    %v1110 = vunpack.c.l.b16 %v1007
    %v1111 = vunpack.c.l.b16 %v1008
    %v1112 = vunpack.c.l.b16 %v1009
    %v1113 = vunpack.c.l.b16 %v1010
    %v1114 = vunpack.c.l.b16 %v1011
    %v1115 = vpack.c.b16 %v1068, %v1067
    %v1116 = vpack.c.b16 %v1070, %v1069
    %v1117 = vpack.c.b16 %v1072, %v1071
    %v1118 = vpack.c.b16 %v1074, %v1073
    %v1119 = vpack.c.b16 %v1076, %v1075
    %v1120 = vpack.c.b16 %v1078, %v1077
    %v1121 = vpack.c.b16 %v1080, %v1079
    %v1122 = vpack.c.b16 %v1082, %v1081
    %v1123 = vpack.c.b16 %v1084, %v1083
    %v1124 = vpack.c.b16 %v1086, %v1085
    %v1125 = vpack.c.b16 %v1088, %v1087
    %v1126 = vpack.c.b16 %v1090, %v1089
    %v1127 = vpack.c.b16 %v1092, %v1091
    %v1128 = vpack.c.b16 %v1094, %v1093
    %v1129 = vpack.c.b16 %v1096, %v1095
    %v1130 = vpack.c.b16 %v1098, %v1097
    %v1131 = vpack.c.b16 %v1100, %v1099
    %v1132 = vpack.c.b16 %v1102, %v1101
    %v1133 = vpack.c.b16 %v1104, %v1103
    %v1134 = vpack.c.b16 %v1106, %v1105
    %v1135 = vpack.c.b16 %v1108, %v1107
    %v1136 = vpack.c.b16 %v1110, %v1109
    %v1137 = vpack.c.b16 %v1112, %v1111
    %v1138 = vpack.c.b16 %v1114, %v1113
    %1163 = vmatprep.subr.bf16.mxu0 0
    %1164 = vmatpush1.bf16.msra.mxu0 %v1122
    %1165 = vmatprep.subr.bf16.mxu0 0
    %1166 = vmatpush1.bf16.msra.mxu0 %v1121
    %1167 = vmatprep.subr.bf16.mxu0 0
    %1168 = vmatpush1.bf16.msra.mxu0 %v1120
    %1169 = vmatprep.subr.bf16.mxu0 0
    %1170 = vmatpush1.bf16.msra.mxu0 %v1119
    %1171 = vmatprep.subr.bf16.mxu0 0
    %1172 = vmatpush1.bf16.msra.mxu0 %v1118
    %1173 = vmatprep.subr.bf16.mxu0 0
    %1174 = vmatpush1.bf16.msra.mxu0 %v1117
    %1175 = vmatprep.subr.bf16.mxu0 0
    %1176 = vmatpush1.bf16.msra.mxu0 %v1116
    %1177 = vmatprep.subr.bf16.mxu0 0
    %1178 = vmatpush1.bf16.msra.mxu0 %v1115
    %1179 = vmatprep.subr.bf16.mxu0 0
    %1180 = vmatpush2.bf16.msra.mxu0 %v1130
    %1181 = vmatprep.subr.bf16.mxu0 0
    %1182 = vmatpush2.bf16.msra.mxu0 %v1129
    %1183 = vmatprep.subr.bf16.mxu0 0
    %1184 = vmatpush2.bf16.msra.mxu0 %v1128
    %1185 = vmatprep.subr.bf16.mxu0 0
    %1186 = vmatpush2.bf16.msra.mxu0 %v1127
    %1187 = vmatprep.subr.bf16.mxu0 0
    %1188 = vmatpush2.bf16.msra.mxu0 %v1126
    %1189 = vmatprep.subr.bf16.mxu0 0
    %1190 = vmatpush2.bf16.msra.mxu0 %v1125
    %1191 = vmatprep.subr.bf16.mxu0 0
    %1192 = vmatpush2.bf16.msra.mxu0 %v1124
    %1193 = vmatprep.subr.bf16.mxu0 0
    %1194 = vmatpush2.bf16.msra.mxu0 %v1123
    %1195 = vmatprep.mubr.bf16.mxu0 %v962
    %1196 = vmatmul.mubr.bf16.gmra.mxu0 %v961
    %v1197 = vpop.f32.mrf.mxu0
    %v1198 = vadd.f32 %v1017, %v1197
    %v1199 = vpop.f32.mrf.mxu0
    %v1200 = vpop.f32.mrf.mxu0
    %v1201 = vpop.f32.mrf.mxu0
    %1202 = vdwg.mxu0
    %1203 = vmatprep.subr.bf16.mxu0 0
    %1204 = vmatpush1.bf16.msra.mxu0 %v1138
    %1205 = vmatprep.subr.bf16.mxu0 0
    %1206 = vmatpush1.bf16.msra.mxu0 %v1137
    %1207 = vmatprep.subr.bf16.mxu0 0
    %1208 = vmatpush1.bf16.msra.mxu0 %v1136
    %1209 = vmatprep.subr.bf16.mxu0 0
    %1210 = vmatpush1.bf16.msra.mxu0 %v1135
    %1211 = vmatprep.subr.bf16.mxu0 0
    %1212 = vmatpush1.bf16.msra.mxu0 %v1134
    %1213 = vmatprep.subr.bf16.mxu0 0
    %1214 = vmatpush1.bf16.msra.mxu0 %v1133
    %1215 = vmatprep.subr.bf16.mxu0 0
    %1216 = vmatpush1.bf16.msra.mxu0 %v1132
    %1217 = vmatprep.subr.bf16.mxu0 0
    %1218 = vmatpush1.bf16.msra.mxu0 %v1131
    %1219 = vmatprep.subr.bf16.mxu0 0
    %1220 = vmatpush2.bf16.msra.mxu0 0
    %1221 = vmatprep.subr.bf16.mxu0 0
    %1222 = vmatpush2.bf16.msra.mxu0 0
    %1223 = vmatprep.subr.bf16.mxu0 0
    %1224 = vmatpush2.bf16.msra.mxu0 0
    %1225 = vmatprep.subr.bf16.mxu0 0
    %1226 = vmatpush2.bf16.msra.mxu0 0
    %1227 = vmatprep.subr.bf16.mxu0 0
    %1228 = vmatpush2.bf16.msra.mxu0 0
    %1229 = vmatprep.subr.bf16.mxu0 0
    %1230 = vmatpush2.bf16.msra.mxu0 0
    %1231 = vmatprep.subr.bf16.mxu0 0
    %1232 = vmatpush2.bf16.msra.mxu0 0
    %1233 = vmatprep.subr.bf16.mxu0 0
    %1234 = vmatpush2.bf16.msra.mxu0 0
    %1235 = vmatprep.mubr.bf16.mxu0 0
    %1236 = vmatmul.mubr.bf16.gmra.mxu0 %v963
    %v1237 = vpop.f32.mrf.mxu0
    %v1238 = vadd.f32 %v1198, %v1237
    %v1239 = vpop.f32.mrf.mxu0
    %v1240 = vpop.f32.mrf.mxu0
    %v1241 = vpop.f32.mrf.mxu0
    %1242 = vdwg.mxu0
    %s1243 = sld [smem:[#allocation3]]
    %vm1244 = vcmp.ge.f32.partialorder %v1238, 0.0
    %v1245 = vstv %s1243
    %v1246 = vmul.f32 %v1245, %v1238
    %v1247 = vsel %vm1244, %v1238, %v1246
    %v1248 = vpack.c.bf16 %v1247, %v1247
    %v1249 = vld [vmem:[#allocation13] sm:$0xf]
    %v1250 = vld [vmem:[#allocation13 + $0x4] sm:$0xf]
    %v1251 = vld [vmem:[#allocation13 + $0x8] sm:$0xf]
    %v1252 = vld [vmem:[#allocation13 + $0xc] sm:$0xf]
    %v1253 = vld [vmem:[#allocation13 + $0x10] sm:$0xf]
    %v1254 = vld [vmem:[#allocation13 + $0x14] sm:$0xf]
    %v1255 = vld [vmem:[#allocation13 + $0x18] sm:$0xf]
    %v1256 = vld [vmem:[#allocation13 + $0x1c] sm:$0xf]
    %v1257 = vld [vmem:[#allocation13 + $0x20] sm:$0xf]
    %v1258 = vld [vmem:[#allocation13 + $0x24] sm:$0xf]
    %v1259 = vld [vmem:[#allocation13 + $0x28] sm:$0xf]
    %v1260 = vld [vmem:[#allocation13 + $0x2c] sm:$0xf]
    %v1261 = vld [vmem:[#allocation13 + $0x30] sm:$0xf]
    %v1262 = vld [vmem:[#allocation13 + $0x34] sm:$0xf]
    %v1263 = vld [vmem:[#allocation13 + $0x38] sm:$0xf]
    %v1264 = vld [vmem:[#allocation13 + $0x3c] sm:$0xf]
    %v1265 = vld [vmem:[%s9] sm:$0x1]
    %v1267 = vlaneseq
    %v1268 = vshrl.u32 %v1267, 7
    %v1269 = vsub.s32 0, %v1268
    %v1270 = vrot.slane %v1265, %v1269
    %v1288 = vunpack.c.l.b16 %v1249
    %v1289 = vunpack.c.l.b16 %v1250
    %v1290 = vunpack.c.l.b16 %v1251
    %v1291 = vunpack.c.l.b16 %v1252
    %v1292 = vunpack.c.l.b16 %v1253
    %v1293 = vunpack.c.l.b16 %v1254
    %v1294 = vunpack.c.l.b16 %v1255
    %v1295 = vunpack.c.l.b16 %v1256
    %v1296 = vunpack.c.l.b16 %v1257
    %v1297 = vunpack.c.l.b16 %v1258
    %v1298 = vunpack.c.l.b16 %v1259
    %v1299 = vunpack.c.l.b16 %v1260
    %v1300 = vunpack.c.l.b16 %v1261
    %v1301 = vunpack.c.l.b16 %v1262
    %v1302 = vunpack.c.l.b16 %v1263
    %v1303 = vunpack.c.l.b16 %v1264
    %v1304 = vpack.c.b16 %v1289, %v1288
    %v1305 = vpack.c.b16 %v1291, %v1290
    %v1306 = vpack.c.b16 %v1293, %v1292
    %v1307 = vpack.c.b16 %v1295, %v1294
    %v1308 = vpack.c.b16 %v1297, %v1296
    %v1309 = vpack.c.b16 %v1299, %v1298
    %v1310 = vpack.c.b16 %v1301, %v1300
    %v1311 = vpack.c.b16 %v1303, %v1302
    %1320 = vmatprep.subr.bf16.mxu0 0
    %1321 = vmatpush1.bf16.msra.mxu0 %v1311
    %1322 = vmatprep.subr.bf16.mxu0 0
    %1323 = vmatpush1.bf16.msra.mxu0 %v1310
    %1324 = vmatprep.subr.bf16.mxu0 0
    %1325 = vmatpush1.bf16.msra.mxu0 %v1309
    %1326 = vmatprep.subr.bf16.mxu0 0
    %1327 = vmatpush1.bf16.msra.mxu0 %v1308
    %1328 = vmatprep.subr.bf16.mxu0 0
    %1329 = vmatpush1.bf16.msra.mxu0 %v1307
    %1330 = vmatprep.subr.bf16.mxu0 0
    %1331 = vmatpush1.bf16.msra.mxu0 %v1306
    %1332 = vmatprep.subr.bf16.mxu0 0
    %1333 = vmatpush1.bf16.msra.mxu0 %v1305
    %1334 = vmatprep.subr.bf16.mxu0 0
    %1335 = vmatpush1.bf16.msra.mxu0 %v1304
    %1336 = vmatprep.subr.bf16.mxu0 0
    %1337 = vmatpush2.bf16.msra.mxu0 0
    %1338 = vmatprep.subr.bf16.mxu0 0
    %1339 = vmatpush2.bf16.msra.mxu0 0
    %1340 = vmatprep.subr.bf16.mxu0 0
    %1341 = vmatpush2.bf16.msra.mxu0 0
    %1342 = vmatprep.subr.bf16.mxu0 0
    %1343 = vmatpush2.bf16.msra.mxu0 0
    %1344 = vmatprep.subr.bf16.mxu0 0
    %1345 = vmatpush2.bf16.msra.mxu0 0
    %1346 = vmatprep.subr.bf16.mxu0 0
    %1347 = vmatpush2.bf16.msra.mxu0 0
    %1348 = vmatprep.subr.bf16.mxu0 0
    %1349 = vmatpush2.bf16.msra.mxu0 0
    %1350 = vmatprep.subr.bf16.mxu0 0
    %1351 = vmatpush2.bf16.msra.mxu0 0
    %1352 = vmatprep.mubr.bf16.mxu0 0
    %1353 = vmatmul.mubr.bf16.gmra.mxu0 %v1248
    %v1354 = vpop.f32.mrf.mxu0
    %v1355 = vadd.f32 %v1270, %v1354
    %v1356 = vpop.f32.mrf.mxu0
    %v1357 = vpop.f32.mrf.mxu0
    %v1358 = vpop.f32.mrf.mxu0
    %1359 = vdwg.mxu0
    %s1360 = sld [smem:[#allocation4]]
    %vm1361 = vcmp.ge.f32.partialorder %v1355, 0.0
    %v1362 = vstv %s1360
    %v1363 = vmul.f32 %v1362, %v1355
    %v1364 = vsel %vm1361, %v1355, %v1363
    %v1365 = vpack.c.bf16 %v1364, %v1364
    %v1366 = vld [vmem:[#allocation14] sm:$0xf]
    %v1367 = vld [vmem:[#allocation14 + $0x4] sm:$0xf]
    %v1368 = vld [vmem:[#allocation14 + $0x8] sm:$0xf]
    %v1369 = vld [vmem:[#allocation14 + $0xc] sm:$0xf]
    %v1370 = vld [vmem:[#allocation14 + $0x10] sm:$0xf]
    %v1371 = vld [vmem:[#allocation14 + $0x14] sm:$0xf]
    %v1372 = vld [vmem:[#allocation14 + $0x18] sm:$0xf]
    %v1373 = vld [vmem:[#allocation14 + $0x1c] sm:$0xf]
    %v1374 = vld [vmem:[#allocation14 + $0x20] sm:$0xf]
    %v1375 = vld [vmem:[#allocation14 + $0x24] sm:$0xf]
    %v1376 = vld [vmem:[#allocation14 + $0x28] sm:$0xf]
    %v1377 = vld [vmem:[#allocation14 + $0x2c] sm:$0xf]
    %v1378 = vld [vmem:[#allocation14 + $0x30] sm:$0xf]
    %v1379 = vld [vmem:[#allocation14 + $0x34] sm:$0xf]
    %v1380 = vld [vmem:[#allocation14 + $0x38] sm:$0xf]
    %v1381 = vld [vmem:[#allocation14 + $0x3c] sm:$0xf]
    %v1382 = vld [vmem:[%s12] sm:$0x1]
    %v1384 = vlaneseq
    %v1385 = vshrl.u32 %v1384, 7
    %v1386 = vsub.s32 0, %v1385
    %v1387 = vrot.slane %v1382, %v1386
    %v1405 = vunpack.c.l.b16 %v1366
    %v1406 = vunpack.c.l.b16 %v1367
    %v1407 = vunpack.c.l.b16 %v1368
    %v1408 = vunpack.c.l.b16 %v1369
    %v1409 = vunpack.c.l.b16 %v1370
    %v1410 = vunpack.c.l.b16 %v1371
    %v1411 = vunpack.c.l.b16 %v1372
    %v1412 = vunpack.c.l.b16 %v1373
    %v1413 = vunpack.c.l.b16 %v1374
    %v1414 = vunpack.c.l.b16 %v1375
    %v1415 = vunpack.c.l.b16 %v1376
    %v1416 = vunpack.c.l.b16 %v1377
    %v1417 = vunpack.c.l.b16 %v1378
    %v1418 = vunpack.c.l.b16 %v1379
    %v1419 = vunpack.c.l.b16 %v1380
    %v1420 = vunpack.c.l.b16 %v1381
    %v1421 = vpack.c.b16 %v1406, %v1405
    %v1422 = vpack.c.b16 %v1408, %v1407
    %v1423 = vpack.c.b16 %v1410, %v1409
    %v1424 = vpack.c.b16 %v1412, %v1411
    %v1425 = vpack.c.b16 %v1414, %v1413
    %v1426 = vpack.c.b16 %v1416, %v1415
    %v1427 = vpack.c.b16 %v1418, %v1417
    %v1428 = vpack.c.b16 %v1420, %v1419
    %1437 = vmatprep.subr.bf16.mxu0 0
    %1438 = vmatpush1.bf16.msra.mxu0 %v1428
    %1439 = vmatprep.subr.bf16.mxu0 0
    %1440 = vmatpush1.bf16.msra.mxu0 %v1427
    %1441 = vmatprep.subr.bf16.mxu0 0
    %1442 = vmatpush1.bf16.msra.mxu0 %v1426
    %1443 = vmatprep.subr.bf16.mxu0 0
    %1444 = vmatpush1.bf16.msra.mxu0 %v1425
    %1445 = vmatprep.subr.bf16.mxu0 0
    %1446 = vmatpush1.bf16.msra.mxu0 %v1424
    %1447 = vmatprep.subr.bf16.mxu0 0
    %1448 = vmatpush1.bf16.msra.mxu0 %v1423
    %1449 = vmatprep.subr.bf16.mxu0 0
    %1450 = vmatpush1.bf16.msra.mxu0 %v1422
    %1451 = vmatprep.subr.bf16.mxu0 0
    %1452 = vmatpush1.bf16.msra.mxu0 %v1421
    %1453 = vmatprep.subr.bf16.mxu0 0
    %1454 = vmatpush2.bf16.msra.mxu0 0
    %1455 = vmatprep.subr.bf16.mxu0 0
    %1456 = vmatpush2.bf16.msra.mxu0 0
    %1457 = vmatprep.subr.bf16.mxu0 0
    %1458 = vmatpush2.bf16.msra.mxu0 0
    %1459 = vmatprep.subr.bf16.mxu0 0
    %1460 = vmatpush2.bf16.msra.mxu0 0
    %1461 = vmatprep.subr.bf16.mxu0 0
    %1462 = vmatpush2.bf16.msra.mxu0 0
    %1463 = vmatprep.subr.bf16.mxu0 0
    %1464 = vmatpush2.bf16.msra.mxu0 0
    %1465 = vmatprep.subr.bf16.mxu0 0
    %1466 = vmatpush2.bf16.msra.mxu0 0
    %1467 = vmatprep.subr.bf16.mxu0 0
    %1468 = vmatpush2.bf16.msra.mxu0 0
    %1469 = vmatprep.mubr.bf16.mxu0 0
    %1470 = vmatmul.mubr.bf16.gmra.mxu0 %v1365
    %v1471 = vpop.f32.mrf.mxu0
    %v1472 = vadd.f32 %v1387, %v1471
    %v1473 = vpop.f32.mrf.mxu0
    %v1474 = vpop.f32.mrf.mxu0
    %v1475 = vpop.f32.mrf.mxu0
    %1476 = vdwg.mxu0
    %1477 = vst [vmem:[#allocation16] sm:$0xff] %v1472
    // Predicated region
    $region78: #{tpu_custom_call.1} parent=1 // pred_check
      _
    $region79: #{tpu_custom_call.1} parent=1 // pred_check_branch
      %1479 = sbr.rel (0) target = $region81
    $region80: #{tpu_custom_call.1} parent=1 // pred_region
      %s1481 = ssub.s32 128, 128
      %1482 = vsyncadd [#allocation7], %s1481
      %s1484 = sshll.u32 [#allocation16], 4
      %s1485 = int_to_ptr.vmem [resolvable:$true] %s1484
      %1487 = dma.vmem_to_hbm [thread:$0]  %s1485, 128, %s13, [#allocation7]
    $region81: #{tpu_custom_call.1} parent=1 // pred_fallthru
      _
    // Predicated region
    $region82: #{tpu_custom_call.1} parent=1 // pred_check
      _
    $region83: #{tpu_custom_call.1} parent=1 // pred_check_branch
      %1489 = sbr.rel (0) target = $region85
    $region84: #{tpu_custom_call.1} parent=1 // pred_region
      %1490 = dma.done [#allocation7], 128
    $region85: #{tpu_custom_call.1} parent=1 // pred_fallthru
      _
    %1491 = vsyncpa [#allocation6], 1
    %1492 = vsyncpa [#allocation9], 1
    %1493 = vsyncpa [#allocation12], 1
    %1494 = vsyncpa [#allocation15], 1
    %1495 = vsyncpa [#allocation7], 1

</llo_original>
